<compile_context>
chip_gen: v6e
topology: v6e:2x2x1
jax: 0.10.0
libtpu: 0.0.40
codegen_flags: <defaults>
</compile_context>

<pallas_src>
import functools

import jax
import jax.numpy as jnp
from jax import lax
from jax.experimental import pallas as pl
from jax.experimental.pallas import tpu as pltpu


def _self_attention_kernel(q_ref, k_ref, v_ref, gamma_ref, beta_ref, o_ref,
                           m_scr, l_scr, acc_scr, *,
                           num_heads: int, eps: float,
                           matmul_dtype, approx_recip: bool):
    # grid = (B, n_q_tiles, n_kv_tiles); the kv (reduction) axis is last.
    kv = pl.program_id(2)

    @pl.when(kv == 0)
    def _init():
        m_scr[...] = jnp.full_like(m_scr, -jnp.inf)
        l_scr[...] = jnp.zeros_like(l_scr)
        acc_scr[...] = jnp.zeros_like(acc_scr)

    q = q_ref[...]                       # (tq, H)
    k = k_ref[...]                       # (tk, H)
    v = v_ref[...]                       # (tk, H)
    tq, H = q.shape
    d = H // num_heads

    q_mm = q.astype(matmul_dtype)
    k_mm = k.astype(matmul_dtype)
    v_mm = v.astype(matmul_dtype)

    # Whole-tile scratch reads (full-width), per-head slices taken from values.
    m_prev = m_scr[...]                  # (tq, nh) f32
    l_prev = l_scr[...]                  # (tq, nh) f32
    acc_prev = acc_scr[...]              # (tq, H)  f32

    m_cols, l_cols, acc_cols = [], [], []
    # Per-head attention with online softmax.  Heads are static lane slices of
    # the hidden axis: no (S,H)->(nh,S,d) transpose, no head-merge transpose.
    for h in range(num_heads):
        lo, hi = h * d, (h + 1) * d
        qh = q_mm[:, lo:hi]              # (tq, d)
        kh = k_mm[:, lo:hi]              # (tk, d)
        vh = v_mm[:, lo:hi]              # (tk, d)

        # scores = q @ k^T  (contraction over d; NO 1/sqrt(d) scaling,
        # matching the PyTorch module).  f32 accumulation on the MXU.
        s = lax.dot_general(qh, kh, (((1,), (1,)), ((), ())),
                            preferred_element_type=jnp.float32)  # (tq, tk)

        m_h_prev = m_prev[:, h:h + 1]                            # (tq, 1)
        l_h_prev = l_prev[:, h:h + 1]                            # (tq, 1)
        m_h = jnp.maximum(m_h_prev, jnp.max(s, axis=-1, keepdims=True))
        alpha = jnp.exp(m_h_prev - m_h)                          # (tq, 1)
        p = jnp.exp(s - m_h)                                     # (tq, tk) f32

        l_h = alpha * l_h_prev + jnp.sum(p, axis=-1, keepdims=True)

        # Unnormalized p @ v (deferred softmax normalization).
        pv = jnp.dot(p.astype(matmul_dtype), vh,
                     preferred_element_type=jnp.float32)         # (tq, d) f32
        acc_h = alpha * acc_prev[:, lo:hi] + pv                  # (tq, d)

        m_cols.append(m_h)
        l_cols.append(l_h)
        acc_cols.append(acc_h)

    # Re-assemble lane-dense tiles -> single full-width (unmasked) stores.
    m_scr[...] = jnp.concatenate(m_cols, axis=1)                 # (tq, nh)
    l_scr[...] = jnp.concatenate(l_cols, axis=1)                 # (tq, nh)
    acc_scr[...] = jnp.concatenate(acc_cols, axis=1)             # (tq, H)

    # TODO(synk): optional `attention_weight` top-k masking path (double
    # argsort) not implemented — forward is exercised with attention_weight=None.

    @pl.when(kv == pl.num_programs(2) - 1)
    def _finalize():
        # One reciprocal per (row, head) instead of dividing every score.
        inv_l = pl.reciprocal(l_scr[...], approx=approx_recip)   # (tq, nh)
        acc = acc_scr[...]                                       # (tq, H) f32
        out = jnp.concatenate(
            [acc[:, h * d:(h + 1) * d] * inv_l[:, h:h + 1]
             for h in range(num_heads)], axis=1)                 # (tq, H)

        # LayerNorm over hidden axis (biased variance, like torch.nn.LayerNorm).
        mean = jnp.mean(out, axis=-1, keepdims=True)
        ctr = out - mean
        var = jnp.mean(ctr * ctr, axis=-1, keepdims=True)
        normed = ctr * lax.rsqrt(var + eps)
        o_ref[...] = (normed * gamma_ref[...] + beta_ref[...]).astype(o_ref.dtype)


def _pick_seq_tile(S: int, target: int) -> int:
    """Largest multiple-of-8 divisor of S not exceeding `target`, else S."""
    if S <= target:
        return S
    for t in range(target, 7, -8):
        if S % t == 0:
            return t
    return S


def self_attention(q, k, v, gamma, beta, *, num_heads: int, eps: float = 1e-5,
                   matmul_dtype=jnp.bfloat16, q_tile: int = 128,
                   kv_tile: int = 128):
    B, S, H = q.shape
    assert H % num_heads == 0
    tq = _pick_seq_tile(S, q_tile)
    tk = _pick_seq_tile(S, kv_tile)
    n_q, n_kv = S // tq, S // tk

    gamma2d = gamma.reshape(1, H).astype(jnp.float32)
    beta2d = beta.reshape(1, H).astype(jnp.float32)

    approx_recip = jnp.dtype(matmul_dtype) != jnp.dtype(jnp.float32)

    kernel = functools.partial(
        _self_attention_kernel, num_heads=num_heads, eps=eps,
        matmul_dtype=matmul_dtype, approx_recip=approx_recip)

    return pl.pallas_call(
        kernel,
        out_shape=jax.ShapeDtypeStruct((B, S, H), q.dtype),
        grid_spec=pltpu.PrefetchScalarGridSpec(
            num_scalar_prefetch=0,
            grid=(B, n_q, n_kv),
            in_specs=[
                # None (Squeezed) batch dim -> kernel refs are 2-D (tq/tk, H).
                pl.BlockSpec((None, tq, H), lambda b, qi, ki: (b, qi, 0)),
                pl.BlockSpec((None, tk, H), lambda b, qi, ki: (b, ki, 0)),
                pl.BlockSpec((None, tk, H), lambda b, qi, ki: (b, ki, 0)),
                pl.BlockSpec((1, H), lambda b, qi, ki: (0, 0)),  # gamma (resident)
                pl.BlockSpec((1, H), lambda b, qi, ki: (0, 0)),  # beta  (resident)
            ],
            out_specs=pl.BlockSpec((None, tq, H), lambda b, qi, ki: (b, qi, 0)),
            scratch_shapes=[
                pltpu.VMEM((tq, num_heads), jnp.float32),  # running max m
                pltpu.VMEM((tq, num_heads), jnp.float32),  # running sum l
                pltpu.VMEM((tq, H), jnp.float32),          # unnormalized out acc
            ],
        ),
        compiler_params=pltpu.CompilerParams(
            # batch & q-tile axes shard across TCs (megacore) and pipeline;
            # kv is the accumulator (reduction) axis.
            dimension_semantics=("parallel", "parallel", "arbitrary"),
            # Tiles (tq=tk<=128, full H) stay far under the per-TC VMEM budget.
            vmem_limit_bytes=64 * 1024 * 1024,
        ),
    )(q, k, v, gamma2d, beta2d)


def _reference(q, k, v, gamma, beta, *, num_heads: int, eps: float = 1e-5):
    B, S, H = q.shape
    d = H // num_heads

    def split(x):
        return x.reshape(B, S, num_heads, d).transpose(0, 2, 1, 3)

    qh, kh, vh = split(q), split(k), split(v)
    scores = jnp.einsum('bhqd,bhkd->bhqk', qh, kh)
    probs = jax.nn.softmax(scores, axis=-1)
    out = jnp.einsum('bhqk,bhkd->bhqd', probs, vh)
    out = out.transpose(0, 2, 1, 3).reshape(B, S, H)
    mean = jnp.mean(out, axis=-1, keepdims=True)
    var = jnp.mean((out - mean) ** 2, axis=-1, keepdims=True)
    return (out - mean) * jax.lax.rsqrt(var + eps) * gamma + beta


if __name__ == "__main__":
    B, S, H = 2, 8, 32
    num_heads = 8

    key = jax.random.PRNGKey(0)
    kq, kk, kv, kg, kb = jax.random.split(key, 5)
    q = jax.random.normal(kq, (B, S, H), dtype=jnp.float32)
    k = jax.random.normal(kk, (B, S, H), dtype=jnp.float32)
    v = jax.random.normal(kv, (B, S, H), dtype=jnp.float32)

    # LayerNorm affine params (perturbed from the default 1/0 init so the
    # gamma/beta broadcast path is actually exercised).
    gamma = 1.0 + 0.1 * jax.random.normal(kg, (H,), dtype=jnp.float32)
    beta = 0.1 * jax.random.normal(kb, (H,), dtype=jnp.float32)

    ref = _reference(q, k, v, gamma, beta, num_heads=num_heads)

    # Fast path: bf16 MXU operands, f32 accumulation / softmax / LayerNorm.
    out_fast = self_attention(q, k, v, gamma, beta, num_heads=num_heads)
    out_fast = jax.block_until_ready(out_fast)
    assert bool(jnp.allclose(out_fast, ref, atol=5e-2, rtol=5e-2)), \
        "bf16-path mismatch vs reference"

    # Precise path: f32 matmul operands — tight numerical check of the
    # flash/online-softmax + fused-LayerNorm structure.
    out_f32 = self_attention(q, k, v, gamma, beta, num_heads=num_heads,
                             matmul_dtype=jnp.float32)
    out_f32 = jax.block_until_ready(out_f32)
    assert bool(jnp.allclose(out_f32, ref, atol=1e-4, rtol=1e-4)), \
        "f32-path mismatch vs reference"

    print("KERNEL_OK")
</pallas_src>

<mosaic_0001>
module attributes {stable_mosaic.version = 11 : i64} {
  func.func @_self_attention_kernel(%arg0: i32, %arg1: i32, %arg2: i32, %arg3: memref<1x8x32xf32, #tpu.memory_space<vmem>>, %arg4: memref<1x8x32xf32, #tpu.memory_space<vmem>>, %arg5: memref<1x8x32xf32, #tpu.memory_space<vmem>>, %arg6: memref<1x32xf32, #tpu.memory_space<vmem>>, %arg7: memref<1x32xf32, #tpu.memory_space<vmem>>, %arg8: memref<1x8x32xf32, #tpu.memory_space<vmem>>, %arg9: memref<8x8xf32, #tpu.memory_space<vmem>>, %arg10: memref<8x8xf32, #tpu.memory_space<vmem>>, %arg11: memref<8x32xf32, #tpu.memory_space<vmem>>) attributes {dimension_semantics = [#tpu.dimension_semantics<parallel>, #tpu.dimension_semantics<parallel>, #tpu.dimension_semantics<arbitrary>], iteration_bounds = array<i64: 2, 1, 1>, scalar_prefetch = 0 : i64, scratch_operands = 3 : i64, tpu.core_type = #tpu.core_type<tc>, window_params = [{transform_indices = @transform_0, window_bounds = array<i64: 1, 8, 32>}, {transform_indices = @transform_1, window_bounds = array<i64: 1, 8, 32>}, {transform_indices = @transform_2, window_bounds = array<i64: 1, 8, 32>}, {pipeline_mode = #tpu.pipeline_mode<synchronous>, transform_indices = @transform_3, window_bounds = array<i64: 1, 32>}, {pipeline_mode = #tpu.pipeline_mode<synchronous>, transform_indices = @transform_4, window_bounds = array<i64: 1, 32>}, {transform_indices = @transform_5, window_bounds = array<i64: 1, 8, 32>}]} {
    %c0_i32 = arith.constant 0 : i32
    %0 = arith.cmpi eq, %arg2, %c0_i32 : i32
    %1 = arith.extui %0 : i1 to i32
    %c0_i32_0 = arith.constant 0 : i32
    %2 = arith.cmpi ne, %1, %c0_i32_0 : i32
    scf.if %2 {
      %cst_54 = arith.constant 0xFF800000 : f32
      %216 = vector.broadcast %cst_54 : f32 to vector<8x8xf32>
      %c0_55 = arith.constant 0 : index
      %c0_56 = arith.constant 0 : index
      %217 = vector.load %arg9[%c0_55, %c0_56] : memref<8x8xf32, #tpu.memory_space<vmem>>, vector<8x8xf32>
      tpu.vector_store %arg9[%c0_55, %c0_56], %216 {strides = array<i32>} : memref<8x8xf32, #tpu.memory_space<vmem>>, vector<8x8xf32>,
      %cst_57 = arith.constant 0.000000e+00 : f32
      %218 = vector.broadcast %cst_57 : f32 to vector<8x8xf32>
      %c0_58 = arith.constant 0 : index
      %c0_59 = arith.constant 0 : index
      %219 = vector.load %arg10[%c0_58, %c0_59] : memref<8x8xf32, #tpu.memory_space<vmem>>, vector<8x8xf32>
      tpu.vector_store %arg10[%c0_58, %c0_59], %218 {strides = array<i32>} : memref<8x8xf32, #tpu.memory_space<vmem>>, vector<8x8xf32>,
      %cst_60 = arith.constant 0.000000e+00 : f32
      %220 = vector.broadcast %cst_60 : f32 to vector<8x32xf32>
      %c0_61 = arith.constant 0 : index
      %c0_62 = arith.constant 0 : index
      %221 = vector.load %arg11[%c0_61, %c0_62] : memref<8x32xf32, #tpu.memory_space<vmem>>, vector<8x32xf32>
      tpu.vector_store %arg11[%c0_61, %c0_62], %220 {strides = array<i32>} : memref<8x32xf32, #tpu.memory_space<vmem>>, vector<8x32xf32>,
    } else {
    }
    %c0 = arith.constant 0 : index
    %c0_1 = arith.constant 0 : index
    %c0_2 = arith.constant 0 : index
    %3 = vector.load %arg3[%c0, %c0_1, %c0_2] : memref<1x8x32xf32, #tpu.memory_space<vmem>>, vector<1x8x32xf32>
    %4 = vector.shape_cast %3 : vector<1x8x32xf32> to vector<8x32xf32>
    %c0_3 = arith.constant 0 : index
    %c0_4 = arith.constant 0 : index
    %c0_5 = arith.constant 0 : index
    %5 = vector.load %arg4[%c0_3, %c0_4, %c0_5] : memref<1x8x32xf32, #tpu.memory_space<vmem>>, vector<1x8x32xf32>
    %6 = vector.shape_cast %5 : vector<1x8x32xf32> to vector<8x32xf32>
    %c0_6 = arith.constant 0 : index
    %c0_7 = arith.constant 0 : index
    %c0_8 = arith.constant 0 : index
    %7 = vector.load %arg5[%c0_6, %c0_7, %c0_8] : memref<1x8x32xf32, #tpu.memory_space<vmem>>, vector<1x8x32xf32>
    %8 = vector.shape_cast %7 : vector<1x8x32xf32> to vector<8x32xf32>
    %9 = arith.truncf %4 : vector<8x32xf32> to vector<8x32xbf16>
    %10 = arith.truncf %6 : vector<8x32xf32> to vector<8x32xbf16>
    %11 = arith.truncf %8 : vector<8x32xf32> to vector<8x32xbf16>
    %c0_9 = arith.constant 0 : index
    %c0_10 = arith.constant 0 : index
    %12 = vector.load %arg9[%c0_9, %c0_10] : memref<8x8xf32, #tpu.memory_space<vmem>>, vector<8x8xf32>
    %c0_11 = arith.constant 0 : index
    %c0_12 = arith.constant 0 : index
    %13 = vector.load %arg10[%c0_11, %c0_12] : memref<8x8xf32, #tpu.memory_space<vmem>>, vector<8x8xf32>
    %c0_13 = arith.constant 0 : index
    %c0_14 = arith.constant 0 : index
    %14 = vector.load %arg11[%c0_13, %c0_14] : memref<8x32xf32, #tpu.memory_space<vmem>>, vector<8x32xf32>
    %15 = vector.extract_strided_slice %9 {offsets = [0, 0], sizes = [8, 4], strides = [1, 1]} : vector<8x32xbf16> to vector<8x4xbf16>
    %16 = vector.extract_strided_slice %10 {offsets = [0, 0], sizes = [8, 4], strides = [1, 1]} : vector<8x32xbf16> to vector<8x4xbf16>
    %17 = vector.extract_strided_slice %11 {offsets = [0, 0], sizes = [8, 4], strides = [1, 1]} : vector<8x32xbf16> to vector<8x4xbf16>
    %cst = arith.constant dense<0.000000e+00> : vector<8x8xf32>
    %18 = tpu.matmul %15, %16, %cst {dimension_numbers = #tpu.dot_dimension_numbers<[1], [1], [0], [0], [0, 0, 1, 0], [], []>} : vector<8x4xbf16>, vector<8x4xbf16>, vector<8x8xf32> -> vector<8x8xf32>
    %19 = vector.extract_strided_slice %12 {offsets = [0, 0], sizes = [8, 1], strides = [1, 1]} : vector<8x8xf32> to vector<8x1xf32>
    %20 = vector.extract_strided_slice %13 {offsets = [0, 0], sizes = [8, 1], strides = [1, 1]} : vector<8x8xf32> to vector<8x1xf32>
    %cst_15 = arith.constant dense<0xFF800000> : vector<8xf32>
    %21 = vector.multi_reduction <maximumf>, %18, %cst_15 [1] : vector<8x8xf32> to vector<8xf32>
    %22 = vector.shape_cast %21 : vector<8xf32> to vector<8x1xf32>
    %23 = arith.maximumf %19, %22 : vector<8x1xf32>
    %24 = arith.subf %19, %23 : vector<8x1xf32>
    %25 = math.exp %24 : vector<8x1xf32>
    %26 = vector.broadcast %23 : vector<8x1xf32> to vector<8x8xf32>
    %27 = arith.subf %18, %26 : vector<8x8xf32>
    %28 = math.exp %27 : vector<8x8xf32>
    %29 = arith.mulf %25, %20 : vector<8x1xf32>
    %cst_16 = arith.constant dense<0.000000e+00> : vector<8xf32>
    %30 = vector.multi_reduction <add>, %28, %cst_16 [1] : vector<8x8xf32> to vector<8xf32>
    %31 = vector.shape_cast %30 : vector<8xf32> to vector<8x1xf32>
    %32 = arith.addf %29, %31 : vector<8x1xf32>
    %33 = arith.truncf %28 : vector<8x8xf32> to vector<8x8xbf16>
    %cst_17 = arith.constant dense<0.000000e+00> : vector<8x4xf32>
    %34 = tpu.matmul %33, %17, %cst_17 {dimension_numbers = #tpu.dot_dimension_numbers<[1], [0], [0], [1], [0, 0, 1, 1], [], []>} : vector<8x8xbf16>, vector<8x4xbf16>, vector<8x4xf32> -> vector<8x4xf32>
    %35 = vector.extract_strided_slice %14 {offsets = [0, 0], sizes = [8, 4], strides = [1, 1]} : vector<8x32xf32> to vector<8x4xf32>
    %36 = vector.broadcast %25 : vector<8x1xf32> to vector<8x4xf32>
    %37 = arith.mulf %36, %35 : vector<8x4xf32>
    %38 = arith.addf %37, %34 : vector<8x4xf32>
    %39 = vector.extract_strided_slice %9 {offsets = [0, 4], sizes = [8, 4], strides = [1, 1]} : vector<8x32xbf16> to vector<8x4xbf16>
    %40 = vector.extract_strided_slice %10 {offsets = [0, 4], sizes = [8, 4], strides = [1, 1]} : vector<8x32xbf16> to vector<8x4xbf16>
    %41 = vector.extract_strided_slice %11 {offsets = [0, 4], sizes = [8, 4], strides = [1, 1]} : vector<8x32xbf16> to vector<8x4xbf16>
    %cst_18 = arith.constant dense<0.000000e+00> : vector<8x8xf32>
    %42 = tpu.matmul %39, %40, %cst_18 {dimension_numbers = #tpu.dot_dimension_numbers<[1], [1], [0], [0], [0, 0, 1, 0], [], []>} : vector<8x4xbf16>, vector<8x4xbf16>, vector<8x8xf32> -> vector<8x8xf32>
    %43 = vector.extract_strided_slice %12 {offsets = [0, 1], sizes = [8, 1], strides = [1, 1]} : vector<8x8xf32> to vector<8x1xf32>
    %44 = vector.extract_strided_slice %13 {offsets = [0, 1], sizes = [8, 1], strides = [1, 1]} : vector<8x8xf32> to vector<8x1xf32>
    %cst_19 = arith.constant dense<0xFF800000> : vector<8xf32>
    %45 = vector.multi_reduction <maximumf>, %42, %cst_19 [1] : vector<8x8xf32> to vector<8xf32>
    %46 = vector.shape_cast %45 : vector<8xf32> to vector<8x1xf32>
    %47 = arith.maximumf %43, %46 : vector<8x1xf32>
    %48 = arith.subf %43, %47 : vector<8x1xf32>
    %49 = math.exp %48 : vector<8x1xf32>
    %50 = vector.broadcast %47 : vector<8x1xf32> to vector<8x8xf32>
    %51 = arith.subf %42, %50 : vector<8x8xf32>
    %52 = math.exp %51 : vector<8x8xf32>
    %53 = arith.mulf %49, %44 : vector<8x1xf32>
    %cst_20 = arith.constant dense<0.000000e+00> : vector<8xf32>
    %54 = vector.multi_reduction <add>, %52, %cst_20 [1] : vector<8x8xf32> to vector<8xf32>
    %55 = vector.shape_cast %54 : vector<8xf32> to vector<8x1xf32>
    %56 = arith.addf %53, %55 : vector<8x1xf32>
    %57 = arith.truncf %52 : vector<8x8xf32> to vector<8x8xbf16>
    %cst_21 = arith.constant dense<0.000000e+00> : vector<8x4xf32>
    %58 = tpu.matmul %57, %41, %cst_21 {dimension_numbers = #tpu.dot_dimension_numbers<[1], [0], [0], [1], [0, 0, 1, 1], [], []>} : vector<8x8xbf16>, vector<8x4xbf16>, vector<8x4xf32> -> vector<8x4xf32>
    %59 = vector.extract_strided_slice %14 {offsets = [0, 4], sizes = [8, 4], strides = [1, 1]} : vector<8x32xf32> to vector<8x4xf32>
    %60 = vector.broadcast %49 : vector<8x1xf32> to vector<8x4xf32>
    %61 = arith.mulf %60, %59 : vector<8x4xf32>
    %62 = arith.addf %61, %58 : vector<8x4xf32>
    %63 = vector.extract_strided_slice %9 {offsets = [0, 8], sizes = [8, 4], strides = [1, 1]} : vector<8x32xbf16> to vector<8x4xbf16>
    %64 = vector.extract_strided_slice %10 {offsets = [0, 8], sizes = [8, 4], strides = [1, 1]} : vector<8x32xbf16> to vector<8x4xbf16>
    %65 = vector.extract_strided_slice %11 {offsets = [0, 8], sizes = [8, 4], strides = [1, 1]} : vector<8x32xbf16> to vector<8x4xbf16>
    %cst_22 = arith.constant dense<0.000000e+00> : vector<8x8xf32>
    %66 = tpu.matmul %63, %64, %cst_22 {dimension_numbers = #tpu.dot_dimension_numbers<[1], [1], [0], [0], [0, 0, 1, 0], [], []>} : vector<8x4xbf16>, vector<8x4xbf16>, vector<8x8xf32> -> vector<8x8xf32>
    %67 = vector.extract_strided_slice %12 {offsets = [0, 2], sizes = [8, 1], strides = [1, 1]} : vector<8x8xf32> to vector<8x1xf32>
    %68 = vector.extract_strided_slice %13 {offsets = [0, 2], sizes = [8, 1], strides = [1, 1]} : vector<8x8xf32> to vector<8x1xf32>
    %cst_23 = arith.constant dense<0xFF800000> : vector<8xf32>
    %69 = vector.multi_reduction <maximumf>, %66, %cst_23 [1] : vector<8x8xf32> to vector<8xf32>
    %70 = vector.shape_cast %69 : vector<8xf32> to vector<8x1xf32>
    %71 = arith.maximumf %67, %70 : vector<8x1xf32>
    %72 = arith.subf %67, %71 : vector<8x1xf32>
    %73 = math.exp %72 : vector<8x1xf32>
    %74 = vector.broadcast %71 : vector<8x1xf32> to vector<8x8xf32>
    %75 = arith.subf %66, %74 : vector<8x8xf32>
    %76 = math.exp %75 : vector<8x8xf32>
    %77 = arith.mulf %73, %68 : vector<8x1xf32>
    %cst_24 = arith.constant dense<0.000000e+00> : vector<8xf32>
    %78 = vector.multi_reduction <add>, %76, %cst_24 [1] : vector<8x8xf32> to vector<8xf32>
    %79 = vector.shape_cast %78 : vector<8xf32> to vector<8x1xf32>
    %80 = arith.addf %77, %79 : vector<8x1xf32>
    %81 = arith.truncf %76 : vector<8x8xf32> to vector<8x8xbf16>
    %cst_25 = arith.constant dense<0.000000e+00> : vector<8x4xf32>
    %82 = tpu.matmul %81, %65, %cst_25 {dimension_numbers = #tpu.dot_dimension_numbers<[1], [0], [0], [1], [0, 0, 1, 1], [], []>} : vector<8x8xbf16>, vector<8x4xbf16>, vector<8x4xf32> -> vector<8x4xf32>
    %83 = vector.extract_strided_slice %14 {offsets = [0, 8], sizes = [8, 4], strides = [1, 1]} : vector<8x32xf32> to vector<8x4xf32>
    %84 = vector.broadcast %73 : vector<8x1xf32> to vector<8x4xf32>
    %85 = arith.mulf %84, %83 : vector<8x4xf32>
    %86 = arith.addf %85, %82 : vector<8x4xf32>
    %87 = vector.extract_strided_slice %9 {offsets = [0, 12], sizes = [8, 4], strides = [1, 1]} : vector<8x32xbf16> to vector<8x4xbf16>
    %88 = vector.extract_strided_slice %10 {offsets = [0, 12], sizes = [8, 4], strides = [1, 1]} : vector<8x32xbf16> to vector<8x4xbf16>
    %89 = vector.extract_strided_slice %11 {offsets = [0, 12], sizes = [8, 4], strides = [1, 1]} : vector<8x32xbf16> to vector<8x4xbf16>
    %cst_26 = arith.constant dense<0.000000e+00> : vector<8x8xf32>
    %90 = tpu.matmul %87, %88, %cst_26 {dimension_numbers = #tpu.dot_dimension_numbers<[1], [1], [0], [0], [0, 0, 1, 0], [], []>} : vector<8x4xbf16>, vector<8x4xbf16>, vector<8x8xf32> -> vector<8x8xf32>
    %91 = vector.extract_strided_slice %12 {offsets = [0, 3], sizes = [8, 1], strides = [1, 1]} : vector<8x8xf32> to vector<8x1xf32>
    %92 = vector.extract_strided_slice %13 {offsets = [0, 3], sizes = [8, 1], strides = [1, 1]} : vector<8x8xf32> to vector<8x1xf32>
    %cst_27 = arith.constant dense<0xFF800000> : vector<8xf32>
    %93 = vector.multi_reduction <maximumf>, %90, %cst_27 [1] : vector<8x8xf32> to vector<8xf32>
    %94 = vector.shape_cast %93 : vector<8xf32> to vector<8x1xf32>
    %95 = arith.maximumf %91, %94 : vector<8x1xf32>
    %96 = arith.subf %91, %95 : vector<8x1xf32>
    %97 = math.exp %96 : vector<8x1xf32>
    %98 = vector.broadcast %95 : vector<8x1xf32> to vector<8x8xf32>
    %99 = arith.subf %90, %98 : vector<8x8xf32>
    %100 = math.exp %99 : vector<8x8xf32>
    %101 = arith.mulf %97, %92 : vector<8x1xf32>
    %cst_28 = arith.constant dense<0.000000e+00> : vector<8xf32>
    %102 = vector.multi_reduction <add>, %100, %cst_28 [1] : vector<8x8xf32> to vector<8xf32>
    %103 = vector.shape_cast %102 : vector<8xf32> to vector<8x1xf32>
    %104 = arith.addf %101, %103 : vector<8x1xf32>
    %105 = arith.truncf %100 : vector<8x8xf32> to vector<8x8xbf16>
    %cst_29 = arith.constant dense<0.000000e+00> : vector<8x4xf32>
    %106 = tpu.matmul %105, %89, %cst_29 {dimension_numbers = #tpu.dot_dimension_numbers<[1], [0], [0], [1], [0, 0, 1, 1], [], []>} : vector<8x8xbf16>, vector<8x4xbf16>, vector<8x4xf32> -> vector<8x4xf32>
    %107 = vector.extract_strided_slice %14 {offsets = [0, 12], sizes = [8, 4], strides = [1, 1]} : vector<8x32xf32> to vector<8x4xf32>
    %108 = vector.broadcast %97 : vector<8x1xf32> to vector<8x4xf32>
    %109 = arith.mulf %108, %107 : vector<8x4xf32>
    %110 = arith.addf %109, %106 : vector<8x4xf32>
    %111 = vector.extract_strided_slice %9 {offsets = [0, 16], sizes = [8, 4], strides = [1, 1]} : vector<8x32xbf16> to vector<8x4xbf16>
    %112 = vector.extract_strided_slice %10 {offsets = [0, 16], sizes = [8, 4], strides = [1, 1]} : vector<8x32xbf16> to vector<8x4xbf16>
    %113 = vector.extract_strided_slice %11 {offsets = [0, 16], sizes = [8, 4], strides = [1, 1]} : vector<8x32xbf16> to vector<8x4xbf16>
    %cst_30 = arith.constant dense<0.000000e+00> : vector<8x8xf32>
    %114 = tpu.matmul %111, %112, %cst_30 {dimension_numbers = #tpu.dot_dimension_numbers<[1], [1], [0], [0], [0, 0, 1, 0], [], []>} : vector<8x4xbf16>, vector<8x4xbf16>, vector<8x8xf32> -> vector<8x8xf32>
    %115 = vector.extract_strided_slice %12 {offsets = [0, 4], sizes = [8, 1], strides = [1, 1]} : vector<8x8xf32> to vector<8x1xf32>
    %116 = vector.extract_strided_slice %13 {offsets = [0, 4], sizes = [8, 1], strides = [1, 1]} : vector<8x8xf32> to vector<8x1xf32>
    %cst_31 = arith.constant dense<0xFF800000> : vector<8xf32>
    %117 = vector.multi_reduction <maximumf>, %114, %cst_31 [1] : vector<8x8xf32> to vector<8xf32>
    %118 = vector.shape_cast %117 : vector<8xf32> to vector<8x1xf32>
    %119 = arith.maximumf %115, %118 : vector<8x1xf32>
    %120 = arith.subf %115, %119 : vector<8x1xf32>
    %121 = math.exp %120 : vector<8x1xf32>
    %122 = vector.broadcast %119 : vector<8x1xf32> to vector<8x8xf32>
    %123 = arith.subf %114, %122 : vector<8x8xf32>
    %124 = math.exp %123 : vector<8x8xf32>
    %125 = arith.mulf %121, %116 : vector<8x1xf32>
    %cst_32 = arith.constant dense<0.000000e+00> : vector<8xf32>
    %126 = vector.multi_reduction <add>, %124, %cst_32 [1] : vector<8x8xf32> to vector<8xf32>
    %127 = vector.shape_cast %126 : vector<8xf32> to vector<8x1xf32>
    %128 = arith.addf %125, %127 : vector<8x1xf32>
    %129 = arith.truncf %124 : vector<8x8xf32> to vector<8x8xbf16>
    %cst_33 = arith.constant dense<0.000000e+00> : vector<8x4xf32>
    %130 = tpu.matmul %129, %113, %cst_33 {dimension_numbers = #tpu.dot_dimension_numbers<[1], [0], [0], [1], [0, 0, 1, 1], [], []>} : vector<8x8xbf16>, vector<8x4xbf16>, vector<8x4xf32> -> vector<8x4xf32>
    %131 = vector.extract_strided_slice %14 {offsets = [0, 16], sizes = [8, 4], strides = [1, 1]} : vector<8x32xf32> to vector<8x4xf32>
    %132 = vector.broadcast %121 : vector<8x1xf32> to vector<8x4xf32>
    %133 = arith.mulf %132, %131 : vector<8x4xf32>
    %134 = arith.addf %133, %130 : vector<8x4xf32>
    %135 = vector.extract_strided_slice %9 {offsets = [0, 20], sizes = [8, 4], strides = [1, 1]} : vector<8x32xbf16> to vector<8x4xbf16>
    %136 = vector.extract_strided_slice %10 {offsets = [0, 20], sizes = [8, 4], strides = [1, 1]} : vector<8x32xbf16> to vector<8x4xbf16>
    %137 = vector.extract_strided_slice %11 {offsets = [0, 20], sizes = [8, 4], strides = [1, 1]} : vector<8x32xbf16> to vector<8x4xbf16>
    %cst_34 = arith.constant dense<0.000000e+00> : vector<8x8xf32>
    %138 = tpu.matmul %135, %136, %cst_34 {dimension_numbers = #tpu.dot_dimension_numbers<[1], [1], [0], [0], [0, 0, 1, 0], [], []>} : vector<8x4xbf16>, vector<8x4xbf16>, vector<8x8xf32> -> vector<8x8xf32>
    %139 = vector.extract_strided_slice %12 {offsets = [0, 5], sizes = [8, 1], strides = [1, 1]} : vector<8x8xf32> to vector<8x1xf32>
    %140 = vector.extract_strided_slice %13 {offsets = [0, 5], sizes = [8, 1], strides = [1, 1]} : vector<8x8xf32> to vector<8x1xf32>
    %cst_35 = arith.constant dense<0xFF800000> : vector<8xf32>
    %141 = vector.multi_reduction <maximumf>, %138, %cst_35 [1] : vector<8x8xf32> to vector<8xf32>
    %142 = vector.shape_cast %141 : vector<8xf32> to vector<8x1xf32>
    %143 = arith.maximumf %139, %142 : vector<8x1xf32>
    %144 = arith.subf %139, %143 : vector<8x1xf32>
    %145 = math.exp %144 : vector<8x1xf32>
    %146 = vector.broadcast %143 : vector<8x1xf32> to vector<8x8xf32>
    %147 = arith.subf %138, %146 : vector<8x8xf32>
    %148 = math.exp %147 : vector<8x8xf32>
    %149 = arith.mulf %145, %140 : vector<8x1xf32>
    %cst_36 = arith.constant dense<0.000000e+00> : vector<8xf32>
    %150 = vector.multi_reduction <add>, %148, %cst_36 [1] : vector<8x8xf32> to vector<8xf32>
    %151 = vector.shape_cast %150 : vector<8xf32> to vector<8x1xf32>
    %152 = arith.addf %149, %151 : vector<8x1xf32>
    %153 = arith.truncf %148 : vector<8x8xf32> to vector<8x8xbf16>
    %cst_37 = arith.constant dense<0.000000e+00> : vector<8x4xf32>
    %154 = tpu.matmul %153, %137, %cst_37 {dimension_numbers = #tpu.dot_dimension_numbers<[1], [0], [0], [1], [0, 0, 1, 1], [], []>} : vector<8x8xbf16>, vector<8x4xbf16>, vector<8x4xf32> -> vector<8x4xf32>
    %155 = vector.extract_strided_slice %14 {offsets = [0, 20], sizes = [8, 4], strides = [1, 1]} : vector<8x32xf32> to vector<8x4xf32>
    %156 = vector.broadcast %145 : vector<8x1xf32> to vector<8x4xf32>
    %157 = arith.mulf %156, %155 : vector<8x4xf32>
    %158 = arith.addf %157, %154 : vector<8x4xf32>
    %159 = vector.extract_strided_slice %9 {offsets = [0, 24], sizes = [8, 4], strides = [1, 1]} : vector<8x32xbf16> to vector<8x4xbf16>
    %160 = vector.extract_strided_slice %10 {offsets = [0, 24], sizes = [8, 4], strides = [1, 1]} : vector<8x32xbf16> to vector<8x4xbf16>
    %161 = vector.extract_strided_slice %11 {offsets = [0, 24], sizes = [8, 4], strides = [1, 1]} : vector<8x32xbf16> to vector<8x4xbf16>
    %cst_38 = arith.constant dense<0.000000e+00> : vector<8x8xf32>
    %162 = tpu.matmul %159, %160, %cst_38 {dimension_numbers = #tpu.dot_dimension_numbers<[1], [1], [0], [0], [0, 0, 1, 0], [], []>} : vector<8x4xbf16>, vector<8x4xbf16>, vector<8x8xf32> -> vector<8x8xf32>
    %163 = vector.extract_strided_slice %12 {offsets = [0, 6], sizes = [8, 1], strides = [1, 1]} : vector<8x8xf32> to vector<8x1xf32>
    %164 = vector.extract_strided_slice %13 {offsets = [0, 6], sizes = [8, 1], strides = [1, 1]} : vector<8x8xf32> to vector<8x1xf32>
    %cst_39 = arith.constant dense<0xFF800000> : vector<8xf32>
    %165 = vector.multi_reduction <maximumf>, %162, %cst_39 [1] : vector<8x8xf32> to vector<8xf32>
    %166 = vector.shape_cast %165 : vector<8xf32> to vector<8x1xf32>
    %167 = arith.maximumf %163, %166 : vector<8x1xf32>
    %168 = arith.subf %163, %167 : vector<8x1xf32>
    %169 = math.exp %168 : vector<8x1xf32>
    %170 = vector.broadcast %167 : vector<8x1xf32> to vector<8x8xf32>
    %171 = arith.subf %162, %170 : vector<8x8xf32>
    %172 = math.exp %171 : vector<8x8xf32>
    %173 = arith.mulf %169, %164 : vector<8x1xf32>
    %cst_40 = arith.constant dense<0.000000e+00> : vector<8xf32>
    %174 = vector.multi_reduction <add>, %172, %cst_40 [1] : vector<8x8xf32> to vector<8xf32>
    %175 = vector.shape_cast %174 : vector<8xf32> to vector<8x1xf32>
    %176 = arith.addf %173, %175 : vector<8x1xf32>
    %177 = arith.truncf %172 : vector<8x8xf32> to vector<8x8xbf16>
    %cst_41 = arith.constant dense<0.000000e+00> : vector<8x4xf32>
    %178 = tpu.matmul %177, %161, %cst_41 {dimension_numbers = #tpu.dot_dimension_numbers<[1], [0], [0], [1], [0, 0, 1, 1], [], []>} : vector<8x8xbf16>, vector<8x4xbf16>, vector<8x4xf32> -> vector<8x4xf32>
    %179 = vector.extract_strided_slice %14 {offsets = [0, 24], sizes = [8, 4], strides = [1, 1]} : vector<8x32xf32> to vector<8x4xf32>
    %180 = vector.broadcast %169 : vector<8x1xf32> to vector<8x4xf32>
    %181 = arith.mulf %180, %179 : vector<8x4xf32>
    %182 = arith.addf %181, %178 : vector<8x4xf32>
    %183 = vector.extract_strided_slice %9 {offsets = [0, 28], sizes = [8, 4], strides = [1, 1]} : vector<8x32xbf16> to vector<8x4xbf16>
    %184 = vector.extract_strided_slice %10 {offsets = [0, 28], sizes = [8, 4], strides = [1, 1]} : vector<8x32xbf16> to vector<8x4xbf16>
    %185 = vector.extract_strided_slice %11 {offsets = [0, 28], sizes = [8, 4], strides = [1, 1]} : vector<8x32xbf16> to vector<8x4xbf16>
    %cst_42 = arith.constant dense<0.000000e+00> : vector<8x8xf32>
    %186 = tpu.matmul %183, %184, %cst_42 {dimension_numbers = #tpu.dot_dimension_numbers<[1], [1], [0], [0], [0, 0, 1, 0], [], []>} : vector<8x4xbf16>, vector<8x4xbf16>, vector<8x8xf32> -> vector<8x8xf32>
    %187 = vector.extract_strided_slice %12 {offsets = [0, 7], sizes = [8, 1], strides = [1, 1]} : vector<8x8xf32> to vector<8x1xf32>
    %188 = vector.extract_strided_slice %13 {offsets = [0, 7], sizes = [8, 1], strides = [1, 1]} : vector<8x8xf32> to vector<8x1xf32>
    %cst_43 = arith.constant dense<0xFF800000> : vector<8xf32>
    %189 = vector.multi_reduction <maximumf>, %186, %cst_43 [1] : vector<8x8xf32> to vector<8xf32>
    %190 = vector.shape_cast %189 : vector<8xf32> to vector<8x1xf32>
    %191 = arith.maximumf %187, %190 : vector<8x1xf32>
    %192 = arith.subf %187, %191 : vector<8x1xf32>
    %193 = math.exp %192 : vector<8x1xf32>
    %194 = vector.broadcast %191 : vector<8x1xf32> to vector<8x8xf32>
    %195 = arith.subf %186, %194 : vector<8x8xf32>
    %196 = math.exp %195 : vector<8x8xf32>
    %197 = arith.mulf %193, %188 : vector<8x1xf32>
    %cst_44 = arith.constant dense<0.000000e+00> : vector<8xf32>
    %198 = vector.multi_reduction <add>, %196, %cst_44 [1] : vector<8x8xf32> to vector<8xf32>
    %199 = vector.shape_cast %198 : vector<8xf32> to vector<8x1xf32>
    %200 = arith.addf %197, %199 : vector<8x1xf32>
    %201 = arith.truncf %196 : vector<8x8xf32> to vector<8x8xbf16>
    %cst_45 = arith.constant dense<0.000000e+00> : vector<8x4xf32>
    %202 = tpu.matmul %201, %185, %cst_45 {dimension_numbers = #tpu.dot_dimension_numbers<[1], [0], [0], [1], [0, 0, 1, 1], [], []>} : vector<8x8xbf16>, vector<8x4xbf16>, vector<8x4xf32> -> vector<8x4xf32>
    %203 = vector.extract_strided_slice %14 {offsets = [0, 28], sizes = [8, 4], strides = [1, 1]} : vector<8x32xf32> to vector<8x4xf32>
    %204 = vector.broadcast %193 : vector<8x1xf32> to vector<8x4xf32>
    %205 = arith.mulf %204, %203 : vector<8x4xf32>
    %206 = arith.addf %205, %202 : vector<8x4xf32>
    %207 = tpu.concatenate %23, %47, %71, %95, %119, %143, %167, %191 in 1 : vector<8x1xf32>, vector<8x1xf32>, vector<8x1xf32>, vector<8x1xf32>, vector<8x1xf32>, vector<8x1xf32>, vector<8x1xf32>, vector<8x1xf32> -> vector<8x8xf32>
    %c0_46 = arith.constant 0 : index
    %c0_47 = arith.constant 0 : index
    %208 = vector.load %arg9[%c0_46, %c0_47] : memref<8x8xf32, #tpu.memory_space<vmem>>, vector<8x8xf32>
    tpu.vector_store %arg9[%c0_46, %c0_47], %207 {strides = array<i32>} : memref<8x8xf32, #tpu.memory_space<vmem>>, vector<8x8xf32>,
    %209 = tpu.concatenate %32, %56, %80, %104, %128, %152, %176, %200 in 1 : vector<8x1xf32>, vector<8x1xf32>, vector<8x1xf32>, vector<8x1xf32>, vector<8x1xf32>, vector<8x1xf32>, vector<8x1xf32>, vector<8x1xf32> -> vector<8x8xf32>
    %c0_48 = arith.constant 0 : index
    %c0_49 = arith.constant 0 : index
    %210 = vector.load %arg10[%c0_48, %c0_49] : memref<8x8xf32, #tpu.memory_space<vmem>>, vector<8x8xf32>
    tpu.vector_store %arg10[%c0_48, %c0_49], %209 {strides = array<i32>} : memref<8x8xf32, #tpu.memory_space<vmem>>, vector<8x8xf32>,
    %211 = tpu.concatenate %38, %62, %86, %110, %134, %158, %182, %206 in 1 : vector<8x4xf32>, vector<8x4xf32>, vector<8x4xf32>, vector<8x4xf32>, vector<8x4xf32>, vector<8x4xf32>, vector<8x4xf32>, vector<8x4xf32> -> vector<8x32xf32>
    %c0_50 = arith.constant 0 : index
    %c0_51 = arith.constant 0 : index
    %212 = vector.load %arg11[%c0_50, %c0_51] : memref<8x32xf32, #tpu.memory_space<vmem>>, vector<8x32xf32>
    tpu.vector_store %arg11[%c0_50, %c0_51], %211 {strides = array<i32>} : memref<8x32xf32, #tpu.memory_space<vmem>>, vector<8x32xf32>,
    %c0_i32_52 = arith.constant 0 : i32
    %213 = arith.cmpi eq, %arg2, %c0_i32_52 : i32
    %214 = arith.extui %213 : i1 to i32
    %c0_i32_53 = arith.constant 0 : i32
    %215 = arith.cmpi ne, %214, %c0_i32_53 : i32
    scf.if %215 {
      %c0_54 = arith.constant 0 : index
      %c0_55 = arith.constant 0 : index
      %216 = vector.load %arg10[%c0_54, %c0_55] : memref<8x8xf32, #tpu.memory_space<vmem>>, vector<8x8xf32>
      %217 = tpu.reciprocal %216 {approx = true} : vector<8x8xf32> -> vector<8x8xf32>
      %c0_56 = arith.constant 0 : index
      %c0_57 = arith.constant 0 : index
      %218 = vector.load %arg11[%c0_56, %c0_57] : memref<8x32xf32, #tpu.memory_space<vmem>>, vector<8x32xf32>
      %219 = vector.extract_strided_slice %218 {offsets = [0, 0], sizes = [8, 4], strides = [1, 1]} : vector<8x32xf32> to vector<8x4xf32>
      %220 = vector.extract_strided_slice %217 {offsets = [0, 0], sizes = [8, 1], strides = [1, 1]} : vector<8x8xf32> to vector<8x1xf32>
      %221 = vector.broadcast %220 : vector<8x1xf32> to vector<8x4xf32>
      %222 = arith.mulf %219, %221 : vector<8x4xf32>
      %223 = vector.extract_strided_slice %218 {offsets = [0, 4], sizes = [8, 4], strides = [1, 1]} : vector<8x32xf32> to vector<8x4xf32>
      %224 = vector.extract_strided_slice %217 {offsets = [0, 1], sizes = [8, 1], strides = [1, 1]} : vector<8x8xf32> to vector<8x1xf32>
      %225 = vector.broadcast %224 : vector<8x1xf32> to vector<8x4xf32>
      %226 = arith.mulf %223, %225 : vector<8x4xf32>
      %227 = vector.extract_strided_slice %218 {offsets = [0, 8], sizes = [8, 4], strides = [1, 1]} : vector<8x32xf32> to vector<8x4xf32>
      %228 = vector.extract_strided_slice %217 {offsets = [0, 2], sizes = [8, 1], strides = [1, 1]} : vector<8x8xf32> to vector<8x1xf32>
      %229 = vector.broadcast %228 : vector<8x1xf32> to vector<8x4xf32>
      %230 = arith.mulf %227, %229 : vector<8x4xf32>
      %231 = vector.extract_strided_slice %218 {offsets = [0, 12], sizes = [8, 4], strides = [1, 1]} : vector<8x32xf32> to vector<8x4xf32>
      %232 = vector.extract_strided_slice %217 {offsets = [0, 3], sizes = [8, 1], strides = [1, 1]} : vector<8x8xf32> to vector<8x1xf32>
      %233 = vector.broadcast %232 : vector<8x1xf32> to vector<8x4xf32>
      %234 = arith.mulf %231, %233 : vector<8x4xf32>
      %235 = vector.extract_strided_slice %218 {offsets = [0, 16], sizes = [8, 4], strides = [1, 1]} : vector<8x32xf32> to vector<8x4xf32>
      %236 = vector.extract_strided_slice %217 {offsets = [0, 4], sizes = [8, 1], strides = [1, 1]} : vector<8x8xf32> to vector<8x1xf32>
      %237 = vector.broadcast %236 : vector<8x1xf32> to vector<8x4xf32>
      %238 = arith.mulf %235, %237 : vector<8x4xf32>
      %239 = vector.extract_strided_slice %218 {offsets = [0, 20], sizes = [8, 4], strides = [1, 1]} : vector<8x32xf32> to vector<8x4xf32>
      %240 = vector.extract_strided_slice %217 {offsets = [0, 5], sizes = [8, 1], strides = [1, 1]} : vector<8x8xf32> to vector<8x1xf32>
      %241 = vector.broadcast %240 : vector<8x1xf32> to vector<8x4xf32>
      %242 = arith.mulf %239, %241 : vector<8x4xf32>
      %243 = vector.extract_strided_slice %218 {offsets = [0, 24], sizes = [8, 4], strides = [1, 1]} : vector<8x32xf32> to vector<8x4xf32>
      %244 = vector.extract_strided_slice %217 {offsets = [0, 6], sizes = [8, 1], strides = [1, 1]} : vector<8x8xf32> to vector<8x1xf32>
      %245 = vector.broadcast %244 : vector<8x1xf32> to vector<8x4xf32>
      %246 = arith.mulf %243, %245 : vector<8x4xf32>
      %247 = vector.extract_strided_slice %218 {offsets = [0, 28], sizes = [8, 4], strides = [1, 1]} : vector<8x32xf32> to vector<8x4xf32>
      %248 = vector.extract_strided_slice %217 {offsets = [0, 7], sizes = [8, 1], strides = [1, 1]} : vector<8x8xf32> to vector<8x1xf32>
      %249 = vector.broadcast %248 : vector<8x1xf32> to vector<8x4xf32>
      %250 = arith.mulf %247, %249 : vector<8x4xf32>
      %251 = tpu.concatenate %222, %226, %230, %234, %238, %242, %246, %250 in 1 : vector<8x4xf32>, vector<8x4xf32>, vector<8x4xf32>, vector<8x4xf32>, vector<8x4xf32>, vector<8x4xf32>, vector<8x4xf32>, vector<8x4xf32> -> vector<8x32xf32>
      %cst_58 = arith.constant dense<0.000000e+00> : vector<8xf32>
      %252 = vector.multi_reduction <add>, %251, %cst_58 [1] : vector<8x32xf32> to vector<8xf32>
      %253 = vector.shape_cast %252 : vector<8xf32> to vector<8x1xf32>
      %cst_59 = arith.constant 3.200000e+01 : f32
      %254 = vector.broadcast %cst_59 : f32 to vector<8x1xf32>
      %255 = arith.divf %253, %254 : vector<8x1xf32>
      %256 = vector.broadcast %255 : vector<8x1xf32> to vector<8x32xf32>
      %257 = arith.subf %251, %256 : vector<8x32xf32>
      %258 = arith.mulf %257, %257 : vector<8x32xf32>
      %cst_60 = arith.constant dense<0.000000e+00> : vector<8xf32>
      %259 = vector.multi_reduction <add>, %258, %cst_60 [1] : vector<8x32xf32> to vector<8xf32>
      %260 = vector.shape_cast %259 : vector<8xf32> to vector<8x1xf32>
      %cst_61 = arith.constant 3.200000e+01 : f32
      %261 = vector.broadcast %cst_61 : f32 to vector<8x1xf32>
      %262 = arith.divf %260, %261 : vector<8x1xf32>
      %cst_62 = arith.constant 9.99999974E-6 : f32
      %263 = vector.broadcast %cst_62 : f32 to vector<8x1xf32>
      %264 = arith.addf %262, %263 : vector<8x1xf32>
      %265 = math.rsqrt %264 : vector<8x1xf32>
      %266 = vector.broadcast %265 : vector<8x1xf32> to vector<8x32xf32>
      %267 = arith.mulf %257, %266 : vector<8x32xf32>
      %c0_63 = arith.constant 0 : index
      %c0_64 = arith.constant 0 : index
      %268 = vector.load %arg6[%c0_63, %c0_64] : memref<1x32xf32, #tpu.memory_space<vmem>>, vector<1x32xf32>
      %269 = vector.broadcast %268 : vector<1x32xf32> to vector<8x32xf32>
      %270 = arith.mulf %267, %269 : vector<8x32xf32>
      %c0_65 = arith.constant 0 : index
      %c0_66 = arith.constant 0 : index
      %271 = vector.load %arg7[%c0_65, %c0_66] : memref<1x32xf32, #tpu.memory_space<vmem>>, vector<1x32xf32>
      %272 = vector.broadcast %271 : vector<1x32xf32> to vector<8x32xf32>
      %273 = arith.addf %270, %272 : vector<8x32xf32>
      %c0_67 = arith.constant 0 : index
      %c0_68 = arith.constant 0 : index
      %c0_69 = arith.constant 0 : index
      %274 = vector.load %arg8[%c0_67, %c0_68, %c0_69] : memref<1x8x32xf32, #tpu.memory_space<vmem>>, vector<1x8x32xf32>
      %275 = vector.shape_cast %274 : vector<1x8x32xf32> to vector<8x32xf32>
      %276 = vector.shape_cast %273 : vector<8x32xf32> to vector<1x8x32xf32>
      tpu.vector_store %arg8[%c0_67, %c0_68, %c0_69], %276 {strides = array<i32>} : memref<1x8x32xf32, #tpu.memory_space<vmem>>, vector<1x8x32xf32>,
    } else {
    }
    return
  }
  func.func @transform_0(%arg0: i32, %arg1: i32, %arg2: i32) -> (i32, i32, i32) {
    %c0_i32 = arith.constant 0 : i32
    %c0_i32_0 = arith.constant 0 : i32
    return %arg0, %arg1, %c0_i32 : i32, i32, i32
  }
  func.func @transform_1(%arg0: i32, %arg1: i32, %arg2: i32) -> (i32, i32, i32) {
    %c0_i32 = arith.constant 0 : i32
    %c0_i32_0 = arith.constant 0 : i32
    return %arg0, %arg2, %c0_i32 : i32, i32, i32
  }
  func.func @transform_2(%arg0: i32, %arg1: i32, %arg2: i32) -> (i32, i32, i32) {
    %c0_i32 = arith.constant 0 : i32
    %c0_i32_0 = arith.constant 0 : i32
    return %arg0, %arg2, %c0_i32 : i32, i32, i32
  }
  func.func @transform_3(%arg0: i32, %arg1: i32, %arg2: i32) -> (i32, i32) {
    %c0_i32 = arith.constant 0 : i32
    %c0_i32_0 = arith.constant 0 : i32
    %c0_i32_1 = arith.constant 0 : i32
    return %c0_i32, %c0_i32_0 : i32, i32
  }
  func.func @transform_4(%arg0: i32, %arg1: i32, %arg2: i32) -> (i32, i32) {
    %c0_i32 = arith.constant 0 : i32
    %c0_i32_0 = arith.constant 0 : i32
    %c0_i32_1 = arith.constant 0 : i32
    return %c0_i32, %c0_i32_0 : i32, i32
  }
  func.func @transform_5(%arg0: i32, %arg1: i32, %arg2: i32) -> (i32, i32, i32) {
    %c0_i32 = arith.constant 0 : i32
    %c0_i32_0 = arith.constant 0 : i32
    return %arg0, %arg1, %c0_i32 : i32, i32, i32
  }
}

</mosaic_0001>

<llo_original>
// kernel: tpu_custom_call.1
$region0: #{tpu_custom_call.1}
  #allocation0 [shape = 'u32[]', space=smem, size = 0x4, offset = 0x4, fixed_abs, tag = 'smem constant byte address 0x4 - core index']
  #allocation1 [shape = 'u32[144,128]{1,0:T(1,128)}', space=vmem, size = 0x12000, scoped, tag = 'internal scratch']
  #allocation2 [shape = 'f32[8,8]{1,0:T(8,128)}', space=vmem, size = 0x1000, scoped, tag = 'scratch operand']
  #allocation3 [shape = 'f32[8,8]{1,0:T(8,128)}', space=vmem, size = 0x1000, scoped, tag = 'scratch operand']
  #allocation4 [shape = 'f32[8,32]{1,0:T(8,128)}', space=vmem, size = 0x1000, scoped, tag = 'scratch operand']
  %s0 = inlined_call_operand.hbm [shape: f32[2,8,32], index: 0, kind: input, shape index: {}]
  %s1 = inlined_call_operand.hbm [shape: f32[2,8,32], index: 1, kind: input, shape index: {}]
  %s2 = inlined_call_operand.hbm [shape: f32[2,8,32], index: 2, kind: input, shape index: {}]
  %s3 = inlined_call_operand.vmem [shape: f32[1,32], index: 3, kind: input, shape index: {}]
  %s4 = inlined_call_operand.vmem [shape: f32[1,32], index: 4, kind: input, shape index: {}]
  %s5 = inlined_call_operand.hbm [shape: f32[2,8,32], index: 5, kind: output, shape index: {}]
  %s6 = sld [smem:[#allocation0]]
  $region73: #{tpu_custom_call.1} parent=0
    _
  %s8 = ssub.s32 1, %s6
  %s9 = scalar_select 0, %s8, %s6
  $region1: #{tpu_custom_call.1} parent=0
    #allocation5 [shape = 'u8[8192]{0}', space=vmem, size = 0x2000, scoped, tag = 'input window, operand 0']
    #allocation6 [shape = 's32[2]{0}', space=sflag, size = 0x8, scoped, tag = 'scoped memory for tpu_custom_call.1']
    #allocation7 [shape = 's32[2]{0}', space=sflag, size = 0x8, scoped, tag = 'scoped memory for tpu_custom_call.1']
    #allocation8 [shape = 'u8[8192]{0}', space=vmem, size = 0x2000, scoped, tag = 'input window, operand 1']
    #allocation9 [shape = 's32[2]{0}', space=sflag, size = 0x8, scoped, tag = 'scoped memory for tpu_custom_call.1']
    #allocation10 [shape = 'u8[8192]{0}', space=vmem, size = 0x2000, scoped, tag = 'input window, operand 2']
    #allocation11 [shape = 'u8[8192]{0}', space=vmem, size = 0x2000, scoped, tag = 'output window, operand 0']
    %10 = vsyncpa [#allocation6], 0
    %s11 = scalar_lea.sflag [#allocation6], 1
    %12 = vsyncpa %s11, 0
    %13 = vsyncpa [#allocation9], 0
    %s14 = scalar_lea.sflag [#allocation9], 1
    %15 = vsyncpa %s14, 0
    %16 = vsyncpa [#allocation7], 0
    %s17 = scalar_lea.sflag [#allocation7], 1
    %18 = vsyncpa %s17, 0
    loop: start=0, step=1, limit=4
    $region2: #{tpu_custom_call.1} parent=1 // loop_pre_header
      _
    $region3: #{tpu_custom_call.1} parent=1 // loop_header
      %s20 = sphi 0, %s24
      %p21 = scmp.ge.s32.totalorder %s20, 4
      %s27 = sphi 0, %s46
      %s28 = sphi 0, %s42
      %s29 = sphi 0, %s38
      %s30 = sphi 0, %s27
      %s31 = sphi 0, %s28
      %s32 = sphi 0, %s29
      %s33 = sphi 0, %s30
      %s34 = sphi 0, %s31
      %s35 = sphi 0, %s32
      %s51 = sphi 0, %s53
      %s54 = sphi 0, %s51
      %s55 = sphi 0, %s54
      %s71 = sphi 0, %s55
      %s79 = sphi 0, %s81
      %s82 = sphi 0, %s79
      %s83 = sphi 0, %s82
      %s99 = sphi 0, %s83
      %s107 = sphi 0, %s109
      %s110 = sphi 0, %s107
      %s111 = sphi 0, %s110
      %s127 = sphi 0, %s111
      %s131 = sphi 0, %s131
      %s133 = sphi 0, %s131
      %s134 = sphi 0, %s133
      %s148 = sphi 0, %s134
      %s152 = sphi 0, %s152
      %s154 = sphi 0, %s152
      %s155 = sphi 0, %s154
      %s169 = sphi 0, %s155
      %s177 = sphi 0, %s179
      %s180 = sphi 0, %s177
      %s181 = sphi 0, %s180
      %s197 = sphi 0, %s181
    $region4: #{tpu_custom_call.1} parent=1 // loop_header_branch
      %23 = sbr.rel (%p21) target = $region8
    $region5: #{tpu_custom_call.1} parent=1 // loop_body
      %s25 = ssub.s32 %s20, 1
      %s26 = ssub.s32 %s20, 2
      %s36 = sadd.s32 1, %s29
      %p37 = scmp.ge.s32.totalorder %s36, 1
      %s38 = scalar_select %p37, 0, %s36
      %s39 = sadd.s32 1, %s28
      %s40 = scalar_select %p37, %s39, %s28
      %p41 = scmp.ge.s32.totalorder %s40, 1
      %s42 = scalar_select %p41, 0, %s40
      %s43 = sadd.s32 1, %s27
      %s44 = scalar_select %p41, %s43, %s27
      %p45 = scmp.ge.s32.totalorder %s44, 2
      %s46 = scalar_select %p45, 0, %s44
      %s47 = ssub.s32 %s27, %s46
      %s48 = ssub.s32 %s28, %s42
      %s49 = sor.u32 %s47, %s48
      %p50 = scmp.eq.s32.totalorder %s49, 0
      %s52 = sadd.s32 %s51, 1
      %s53 = scalar_select %p50, %s51, %s52
      %p56 = pneg %p50
      %p57 = scmp.eq.s32.totalorder %s20, 1
      %p58 = por %p56, %p57
      %p59 = scmp.ne.s32.totalorder %s51, %s54
      %p60 = scmp.eq.s32.totalorder %s20, 0
      %p61 = por %p59, %p60
      %p62 = scmp.ne.s32.totalorder %s51, %s54
      %p63 = scmp.eq.s32.totalorder %s25, 1
      %p64 = por %p62, %p63
      %p65 = scmp.ne.s32.totalorder %s54, %s55
      %p66 = scmp.eq.s32.totalorder %s25, 0
      %p67 = por %p65, %p66
      %p68 = scmp.ne.s32.totalorder %s54, %s55
      %p69 = scmp.eq.s32.totalorder %s26, 1
      %p70 = por %p68, %p69
      %p72 = scmp.ne.s32.totalorder %s55, %s71
      %p73 = scmp.eq.s32.totalorder %s26, 0
      %p74 = por %p72, %p73
      %s75 = ssub.s32 %s27, %s46
      %s76 = ssub.s32 %s29, %s38
      %s77 = sor.u32 %s75, %s76
      %p78 = scmp.eq.s32.totalorder %s77, 0
      %s80 = sadd.s32 %s79, 1
      %s81 = scalar_select %p78, %s79, %s80
      %p84 = pneg %p78
      %p85 = scmp.eq.s32.totalorder %s20, 1
      %p86 = por %p84, %p85
      %p87 = scmp.ne.s32.totalorder %s79, %s82
      %p88 = scmp.eq.s32.totalorder %s20, 0
      %p89 = por %p87, %p88
      %p90 = scmp.ne.s32.totalorder %s79, %s82
      %p91 = scmp.eq.s32.totalorder %s25, 1
      %p92 = por %p90, %p91
      %p93 = scmp.ne.s32.totalorder %s82, %s83
      %p94 = scmp.eq.s32.totalorder %s25, 0
      %p95 = por %p93, %p94
      %p96 = scmp.ne.s32.totalorder %s82, %s83
      %p97 = scmp.eq.s32.totalorder %s26, 1
      %p98 = por %p96, %p97
      %p100 = scmp.ne.s32.totalorder %s83, %s99
      %p101 = scmp.eq.s32.totalorder %s26, 0
      %p102 = por %p100, %p101
      %s103 = ssub.s32 %s27, %s46
      %s104 = ssub.s32 %s29, %s38
      %s105 = sor.u32 %s103, %s104
      %p106 = scmp.eq.s32.totalorder %s105, 0
      %s108 = sadd.s32 %s107, 1
      %s109 = scalar_select %p106, %s107, %s108
      %p112 = pneg %p106
      %p113 = scmp.eq.s32.totalorder %s20, 1
      %p114 = por %p112, %p113
      %p115 = scmp.ne.s32.totalorder %s107, %s110
      %p116 = scmp.eq.s32.totalorder %s20, 0
      %p117 = por %p115, %p116
      %p118 = scmp.ne.s32.totalorder %s107, %s110
      %p119 = scmp.eq.s32.totalorder %s25, 1
      %p120 = por %p118, %p119
      %p121 = scmp.ne.s32.totalorder %s110, %s111
      %p122 = scmp.eq.s32.totalorder %s25, 0
      %p123 = por %p121, %p122
      %p124 = scmp.ne.s32.totalorder %s110, %s111
      %p125 = scmp.eq.s32.totalorder %s26, 1
      %p126 = por %p124, %p125
      %p128 = scmp.ne.s32.totalorder %s111, %s127
      %p129 = scmp.eq.s32.totalorder %s26, 0
      %p130 = por %p128, %p129
      %s132 = sadd.s32 %s131, 1
      %p135 = scmp.eq.s32.totalorder %s20, 1
      %p136 = scmp.ne.s32.totalorder %s131, %s133
      %p137 = scmp.eq.s32.totalorder %s20, 0
      %p138 = por %p136, %p137
      %p139 = scmp.ne.s32.totalorder %s131, %s133
      %p140 = scmp.eq.s32.totalorder %s25, 1
      %p141 = por %p139, %p140
      %p142 = scmp.ne.s32.totalorder %s133, %s134
      %p143 = scmp.eq.s32.totalorder %s25, 0
      %p144 = por %p142, %p143
      %p145 = scmp.ne.s32.totalorder %s133, %s134
      %p146 = scmp.eq.s32.totalorder %s26, 1
      %p147 = por %p145, %p146
      %p149 = scmp.ne.s32.totalorder %s134, %s148
      %p150 = scmp.eq.s32.totalorder %s26, 0
      %p151 = por %p149, %p150
      %s153 = sadd.s32 %s152, 1
      %p156 = scmp.eq.s32.totalorder %s20, 1
      %p157 = scmp.ne.s32.totalorder %s152, %s154
      %p158 = scmp.eq.s32.totalorder %s20, 0
      %p159 = por %p157, %p158
      %p160 = scmp.ne.s32.totalorder %s152, %s154
      %p161 = scmp.eq.s32.totalorder %s25, 1
      %p162 = por %p160, %p161
      %p163 = scmp.ne.s32.totalorder %s154, %s155
      %p164 = scmp.eq.s32.totalorder %s25, 0
      %p165 = por %p163, %p164
      %p166 = scmp.ne.s32.totalorder %s154, %s155
      %p167 = scmp.eq.s32.totalorder %s26, 1
      %p168 = por %p166, %p167
      %p170 = scmp.ne.s32.totalorder %s155, %s169
      %p171 = scmp.eq.s32.totalorder %s26, 0
      %p172 = por %p170, %p171
      %s173 = ssub.s32 %s27, %s46
      %s174 = ssub.s32 %s28, %s42
      %s175 = sor.u32 %s173, %s174
      %p176 = scmp.eq.s32.totalorder %s175, 0
      %s178 = sadd.s32 %s177, 1
      %s179 = scalar_select %p176, %s177, %s178
      %p182 = pneg %p176
      %p183 = scmp.eq.s32.totalorder %s20, 1
      %p184 = por %p182, %p183
      %p185 = scmp.ne.s32.totalorder %s177, %s180
      %p186 = scmp.eq.s32.totalorder %s20, 0
      %p187 = por %p185, %p186
      %p188 = scmp.ne.s32.totalorder %s177, %s180
      %p189 = scmp.eq.s32.totalorder %s25, 1
      %p190 = por %p188, %p189
      %p191 = scmp.ne.s32.totalorder %s180, %s181
      %p192 = scmp.eq.s32.totalorder %s25, 0
      %p193 = por %p191, %p192
      %p194 = scmp.ne.s32.totalorder %s180, %s181
      %p195 = scmp.eq.s32.totalorder %s26, 1
      %p196 = por %p194, %p195
      %p198 = scmp.ne.s32.totalorder %s181, %s197
      %p199 = scmp.eq.s32.totalorder %s26, 0
      %p200 = por %p198, %p199
      %p201 = scmp.le.s32.totalorder 1, %s20
      %p202 = scmp.lt.s32.totalorder %s20, 3
      %p203 = pnand %p201, %p202
      %p204 = pneg %p203
      // Predicated region
      $region9: #{tpu_custom_call.1} parent=5 // pred_check
        _
      $region10: #{tpu_custom_call.1} parent=5 // pred_check_branch
        %206 = sbr.rel (%p203) target = $region12
      $region11: #{tpu_custom_call.1} parent=5 // pred_region
        %s207 = ssub.s32 %s20, 1
        // Predicated region
        $region13: #{tpu_custom_call.1} parent=11 // pred_check
          %p208 = pneg %p144
        $region14: #{tpu_custom_call.1} parent=11 // pred_check_branch
          %210 = sbr.rel (%p208) target = $region16
        $region15: #{tpu_custom_call.1} parent=11 // pred_region
          _
        $region16: #{tpu_custom_call.1} parent=11 // pred_fallthru
          _
        // Predicated region
        $region17: #{tpu_custom_call.1} parent=11 // pred_check
          %p211 = pneg %p165
        $region18: #{tpu_custom_call.1} parent=11 // pred_check_branch
          %213 = sbr.rel (%p211) target = $region20
        $region19: #{tpu_custom_call.1} parent=11 // pred_region
          _
        $region20: #{tpu_custom_call.1} parent=11 // pred_fallthru
          _
      $region12: #{tpu_custom_call.1} parent=5 // pred_fallthru
        _
      %p214 = scmp.lt.s32.totalorder %s20, 2
      // Predicated region
      $region21: #{tpu_custom_call.1} parent=5 // pred_check
        %p215 = pneg %p214
      $region22: #{tpu_custom_call.1} parent=5 // pred_check_branch
        %217 = sbr.rel (%p215) target = $region24
      $region23: #{tpu_custom_call.1} parent=5 // pred_region
        // Predicated region
        $region25: #{tpu_custom_call.1} parent=23 // pred_check
          %p218 = pneg %p61
        $region26: #{tpu_custom_call.1} parent=23 // pred_check_branch
          %220 = sbr.rel (%p218) target = $region28
        $region27: #{tpu_custom_call.1} parent=23 // pred_region
          %s221 = sand.u32 %s51, 1
          %s222 = scalar_lea.sflag [#allocation6], %s221
          %s223 = sand.u32 %s51, 1
          %s224 = smul.addr %s223, 8
          %s225 = scalar_lea.vmem [#allocation5], %s224
          %s227 = ssub.s32 128, 128
          %228 = vsyncadd %s222, %s227
          %s229 = sadd.s32 %s28, %s27
          %s230 = smul.addr %s229, 128
          %s231 = scalar_lea.hbm %s0, %s230
          %s233 = sshll.u32 %s225, 4
          %s234 = int_to_ptr.vmem [resolvable:$true] %s233
          %236 = dma.hbm_to_vmem [thread:$0]  %s231, 128, %s234, %s222
        $region28: #{tpu_custom_call.1} parent=23 // pred_fallthru
          _
        // Predicated region
        $region29: #{tpu_custom_call.1} parent=23 // pred_check
          %p237 = pneg %p89
        $region30: #{tpu_custom_call.1} parent=23 // pred_check_branch
          %239 = sbr.rel (%p237) target = $region32
        $region31: #{tpu_custom_call.1} parent=23 // pred_region
          %s240 = sand.u32 %s20, 1
          %s241 = scalar_lea.sflag [#allocation9], %s240
          %s242 = sand.u32 %s79, 1
          %s243 = smul.addr %s242, 8
          %s244 = scalar_lea.vmem [#allocation8], %s243
          %s246 = ssub.s32 128, 128
          %247 = vsyncadd %s241, %s246
          %s248 = sadd.s32 %s29, %s27
          %s249 = smul.addr %s248, 128
          %s250 = scalar_lea.hbm %s1, %s249
          %s252 = sshll.u32 %s244, 4
          %s253 = int_to_ptr.vmem [resolvable:$true] %s252
          %255 = dma.hbm_to_vmem [thread:$0]  %s250, 128, %s253, %s241
        $region32: #{tpu_custom_call.1} parent=23 // pred_fallthru
          _
        // Predicated region
        $region33: #{tpu_custom_call.1} parent=23 // pred_check
          %p256 = pneg %p117
        $region34: #{tpu_custom_call.1} parent=23 // pred_check_branch
          %258 = sbr.rel (%p256) target = $region36
        $region35: #{tpu_custom_call.1} parent=23 // pred_region
          %s259 = sand.u32 %s20, 1
          %s260 = scalar_lea.sflag [#allocation9], %s259
          %s261 = sand.u32 %s107, 1
          %s262 = smul.addr %s261, 8
          %s263 = scalar_lea.vmem [#allocation10], %s262
          %s265 = ssub.s32 128, 128
          %266 = vsyncadd %s260, %s265
          %s267 = sadd.s32 %s29, %s27
          %s268 = smul.addr %s267, 128
          %s269 = scalar_lea.hbm %s2, %s268
          %s271 = sshll.u32 %s263, 4
          %s272 = int_to_ptr.vmem [resolvable:$true] %s271
          %274 = dma.hbm_to_vmem [thread:$0]  %s269, 128, %s272, %s260
        $region36: #{tpu_custom_call.1} parent=23 // pred_fallthru
          _
      $region24: #{tpu_custom_call.1} parent=5 // pred_fallthru
        _
      %p275 = scmp.le.s32.totalorder 1, %s20
      %p276 = scmp.lt.s32.totalorder %s20, 3
      %p277 = pnand %p275, %p276
      %p278 = pneg %p277
      // Predicated region
      $region37: #{tpu_custom_call.1} parent=5 // pred_check
        _
      $region38: #{tpu_custom_call.1} parent=5 // pred_check_branch
        %280 = sbr.rel (%p277) target = $region40
      $region39: #{tpu_custom_call.1} parent=5 // pred_region
        %s281 = ssub.s32 %s20, 1
        %s282 = sand.u32 %s54, 1
        %s283 = scalar_lea.sflag [#allocation6], %s282
        %s284 = sand.u32 %s54, 1
        %s285 = smul.addr %s284, 8
        %s286 = scalar_lea.vmem [#allocation5], %s285
        // Predicated region
        $region41: #{tpu_custom_call.1} parent=39 // pred_check
          %p287 = pneg %p67
        $region42: #{tpu_custom_call.1} parent=39 // pred_check_branch
          %289 = sbr.rel (%p287) target = $region44
        $region43: #{tpu_custom_call.1} parent=39 // pred_region
          %290 = dma.done %s283, 128
        $region44: #{tpu_custom_call.1} parent=39 // pred_fallthru
          _
        %s291 = sand.u32 %s25, 1
        %s292 = scalar_lea.sflag [#allocation9], %s291
        %s293 = sand.u32 %s82, 1
        %s294 = smul.addr %s293, 8
        %s295 = scalar_lea.vmem [#allocation8], %s294
        // Predicated region
        $region45: #{tpu_custom_call.1} parent=39 // pred_check
          %p296 = pneg %p95
        $region46: #{tpu_custom_call.1} parent=39 // pred_check_branch
          %298 = sbr.rel (%p296) target = $region48
        $region47: #{tpu_custom_call.1} parent=39 // pred_region
          %299 = dma.done %s292, 128
        $region48: #{tpu_custom_call.1} parent=39 // pred_fallthru
          _
        %s300 = sand.u32 %s25, 1
        %s301 = scalar_lea.sflag [#allocation9], %s300
        %s302 = sand.u32 %s110, 1
        %s303 = smul.addr %s302, 8
        %s304 = scalar_lea.vmem [#allocation10], %s303
        // Predicated region
        $region49: #{tpu_custom_call.1} parent=39 // pred_check
          %p305 = pneg %p123
        $region50: #{tpu_custom_call.1} parent=39 // pred_check_branch
          %307 = sbr.rel (%p305) target = $region52
        $region51: #{tpu_custom_call.1} parent=39 // pred_region
          %308 = dma.done %s301, 128
        $region52: #{tpu_custom_call.1} parent=39 // pred_fallthru
          _
        %s309 = sand.u32 %s54, 1
        %s310 = scalar_lea.sflag [#allocation6], %s309
        %s311 = sand.u32 %s54, 1
        %s312 = smul.addr %s311, 8
        %s313 = scalar_lea.vmem [#allocation5], %s312
        %p314 = pneg %p67
        %p315 = pneg %p64
        %s316 = sand.u32 %s25, 1
        %s317 = scalar_lea.sflag [#allocation9], %s316
        %s318 = sand.u32 %s82, 1
        %s319 = smul.addr %s318, 8
        %s320 = scalar_lea.vmem [#allocation8], %s319
        %p321 = pneg %p95
        %p322 = pneg %p92
        %s323 = sand.u32 %s25, 1
        %s324 = scalar_lea.sflag [#allocation9], %s323
        %s325 = sand.u32 %s110, 1
        %s326 = smul.addr %s325, 8
        %s327 = scalar_lea.vmem [#allocation10], %s326
        %p328 = pneg %p123
        %p329 = pneg %p120
        %p330 = pneg %p144
        %p331 = pneg %p141
        %p332 = pneg %p165
        %p333 = pneg %p162
        %p334 = pneg %p193
        %p335 = pneg %p190
        %s336 = sand.u32 %s180, 1
        %s337 = scalar_lea.sflag [#allocation7], %s336
        %s338 = sand.u32 %s180, 1
        %s339 = smul.addr %s338, 8
        %s340 = scalar_lea.vmem [#allocation11], %s339
        %p342 = scmp.eq.s32.totalorder %s32, 0
        // Predicated region
        $region53: #{tpu_custom_call.1} parent=39 // pred_check
          %p343 = pneg %p342
        $region54: #{tpu_custom_call.1} parent=39 // pred_check_branch
          %345 = sbr.rel (%p343) target = $region56
        $region55: #{tpu_custom_call.1} parent=39 // pred_region
          %vm346 = vcmask 64512
          %347 = vst.msk [vmem:[#allocation2] sm:$0xff] %vm346, -inf
          %348 = vst.msk [vmem:[#allocation3] sm:$0xff] %vm346, 0.0
          %vm349 = vcmask 261120
          %350 = vst.msk [vmem:[#allocation4] sm:$0xff] %vm349, 0.0
        $region56: #{tpu_custom_call.1} parent=39 // pred_fallthru
          _
        %v351 = vld [vmem:[%s286] sm:$0xff]
        %v352 = vld [vmem:[%s295] sm:$0xff]
        %v353 = vld [vmem:[%s304] sm:$0xff]
        %v354 = vpack.c.bf16 %v351, %v351
        %v355 = vpack.c.bf16 %v352, %v352
        %v356 = vpack.c.bf16 %v353, %v353
        %v357 = vld [vmem:[#allocation2] sm:$0xff]
        %v358 = vld [vmem:[#allocation3] sm:$0xff]
        %v359 = vld [vmem:[#allocation4] sm:$0xff]
        %vm360 = vcmask 31744
        %v362 = vsel %vm360, %v354, 0
        %v365 = vsel %vm360, %v355, 0
        %367 = vmatprep.subr.bf16.mxu0 0
        %368 = vmatpush1.bf16.xpose.msra.mxu0 0
        %369 = vmatprep.subr.bf16.mxu0 0
        %370 = vmatpush1.bf16.xpose.msra.mxu0 0
        %371 = vmatprep.subr.bf16.mxu0 0
        %372 = vmatpush1.bf16.xpose.msra.mxu0 0
        %373 = vmatprep.subr.bf16.mxu0 0
        %374 = vmatpush1.bf16.xpose.msra.mxu0 0
        %375 = vmatprep.subr.bf16.mxu0 0
        %376 = vmatpush1.bf16.xpose.msra.mxu0 0
        %377 = vmatprep.subr.bf16.mxu0 0
        %378 = vmatpush1.bf16.xpose.msra.mxu0 0
        %379 = vmatprep.subr.bf16.mxu0 0
        %380 = vmatpush1.bf16.xpose.msra.mxu0 0
        %381 = vmatprep.subr.bf16.mxu0 0
        %382 = vmatpush1.bf16.xpose.msra.mxu0 %v365
        %383 = vmatprep.subr.bf16.mxu0 0
        %384 = vmatpush2.bf16.xpose.msra.mxu0 0
        %385 = vmatprep.subr.bf16.mxu0 0
        %386 = vmatpush2.bf16.xpose.msra.mxu0 0
        %387 = vmatprep.subr.bf16.mxu0 0
        %388 = vmatpush2.bf16.xpose.msra.mxu0 0
        %389 = vmatprep.subr.bf16.mxu0 0
        %390 = vmatpush2.bf16.xpose.msra.mxu0 0
        %391 = vmatprep.subr.bf16.mxu0 0
        %392 = vmatpush2.bf16.xpose.msra.mxu0 0
        %393 = vmatprep.subr.bf16.mxu0 0
        %394 = vmatpush2.bf16.xpose.msra.mxu0 0
        %395 = vmatprep.subr.bf16.mxu0 0
        %396 = vmatpush2.bf16.xpose.msra.mxu0 0
        %397 = vmatprep.subr.bf16.mxu0 0
        %398 = vmatpush2.bf16.xpose.msra.mxu0 0
        %399 = vmatprep.mubr.bf16.mxu0 0
        %400 = vmatmul.mubr.bf16.gmra.mxu0 %v362
        %v401 = vpop.f32.mrf.mxu0
        %v402 = vadd.f32 0.0, %v401
        %v403 = vpop.f32.mrf.mxu0
        %v404 = vpop.f32.mrf.mxu0
        %v405 = vpop.f32.mrf.mxu0
        %406 = vdwg.mxu0
        %vm407 = vcmask 64512
        %v408 = vsel %vm407, %v402, -inf
        %409 = vmax.xlane.f32.xlu0 %v408
        %v410 = vpop.xlane.xlu0 %409
        %v411 = vmax.f32 %v357, %v410
        %v412 = vsub.f32 %v357, %v411
        %v413 = vmul.f32 %v412, 1.442695
        %v414 = vpow.pop %v413
        %416 = vset.pattern.permute.xlu0 0
        %417 = vperm.xlu0 %416, %v411
        %v418 = vpop.permute.xlu0 %417
        %v420 = vsub.f32 %v402, %v418
        %v421 = vmul.f32 %v420, 1.442695
        %v422 = vpow.pop %v421
        %v423 = vmul.f32 %v414, %v358
        %v424 = vsel %vm407, %v422, 0.0
        %425 = vadd.xlane.f32.xlu0 %v424
        %v426 = vpop.xlane.xlu0 %425
        %v427 = vadd.f32 %v423, %v426
        %v428 = vpack.c.bf16 %v422, %v422
        %v430 = vsel %vm407, %v428, 0
        %vm432 = vcmask 1043456
        %v434 = vsel %vm432, %v356, 0
        %436 = vmatprep.subr.bf16.mxu0 0
        %437 = vmatpush1.bf16.msra.mxu0 0
        %438 = vmatprep.subr.bf16.mxu0 0
        %439 = vmatpush1.bf16.msra.mxu0 0
        %440 = vmatprep.subr.bf16.mxu0 0
        %441 = vmatpush1.bf16.msra.mxu0 0
        %442 = vmatprep.subr.bf16.mxu0 0
        %443 = vmatpush1.bf16.msra.mxu0 0
        %444 = vmatprep.subr.bf16.mxu0 0
        %445 = vmatpush1.bf16.msra.mxu0 0
        %446 = vmatprep.subr.bf16.mxu0 0
        %447 = vmatpush1.bf16.msra.mxu0 0
        %448 = vmatprep.subr.bf16.mxu0 0
        %449 = vmatpush1.bf16.msra.mxu0 0
        %450 = vmatprep.subr.bf16.mxu0 0
        %451 = vmatpush1.bf16.msra.mxu0 %v434
        %452 = vmatprep.subr.bf16.mxu0 0
        %453 = vmatpush2.bf16.msra.mxu0 0
        %454 = vmatprep.subr.bf16.mxu0 0
        %455 = vmatpush2.bf16.msra.mxu0 0
        %456 = vmatprep.subr.bf16.mxu0 0
        %457 = vmatpush2.bf16.msra.mxu0 0
        %458 = vmatprep.subr.bf16.mxu0 0
        %459 = vmatpush2.bf16.msra.mxu0 0
        %460 = vmatprep.subr.bf16.mxu0 0
        %461 = vmatpush2.bf16.msra.mxu0 0
        %462 = vmatprep.subr.bf16.mxu0 0
        %463 = vmatpush2.bf16.msra.mxu0 0
        %464 = vmatprep.subr.bf16.mxu0 0
        %465 = vmatpush2.bf16.msra.mxu0 0
        %466 = vmatprep.subr.bf16.mxu0 0
        %467 = vmatpush2.bf16.msra.mxu0 0
        %468 = vmatprep.mubr.bf16.mxu0 0
        %469 = vmatmul.mubr.bf16.gmra.mxu0 %v430
        %v470 = vpop.f32.mrf.mxu0
        %v471 = vadd.f32 0.0, %v470
        %v472 = vpop.f32.mrf.mxu0
        %v473 = vpop.f32.mrf.mxu0
        %v474 = vpop.f32.mrf.mxu0
        %475 = vdwg.mxu0
        %477 = vset.pattern.permute.xlu0 0
        %478 = vperm.xlu0 %477, %v414
        %v479 = vpop.permute.xlu0 %478
        %v481 = vmul.f32 %v479, %v359
        %v482 = vadd.f32 %v481, %v471
        %484 = vrot.lane.b32.xlu0 %v354, 124
        %v485 = vpop.permute.xlu0 %484
        %487 = vrot.lane.b32.xlu0 %v355, 124
        %v488 = vpop.permute.xlu0 %487
        %v490 = vsel %vm360, %v485, 0
        %v493 = vsel %vm360, %v488, 0
        %495 = vmatprep.subr.bf16.mxu0 0
        %496 = vmatpush1.bf16.xpose.msra.mxu0 0
        %497 = vmatprep.subr.bf16.mxu0 0
        %498 = vmatpush1.bf16.xpose.msra.mxu0 0
        %499 = vmatprep.subr.bf16.mxu0 0
        %500 = vmatpush1.bf16.xpose.msra.mxu0 0
        %501 = vmatprep.subr.bf16.mxu0 0
        %502 = vmatpush1.bf16.xpose.msra.mxu0 0
        %503 = vmatprep.subr.bf16.mxu0 0
        %504 = vmatpush1.bf16.xpose.msra.mxu0 0
        %505 = vmatprep.subr.bf16.mxu0 0
        %506 = vmatpush1.bf16.xpose.msra.mxu0 0
        %507 = vmatprep.subr.bf16.mxu0 0
        %508 = vmatpush1.bf16.xpose.msra.mxu0 0
        %509 = vmatprep.subr.bf16.mxu0 0
        %510 = vmatpush1.bf16.xpose.msra.mxu0 %v493
        %511 = vmatprep.subr.bf16.mxu0 0
        %512 = vmatpush2.bf16.xpose.msra.mxu0 0
        %513 = vmatprep.subr.bf16.mxu0 0
        %514 = vmatpush2.bf16.xpose.msra.mxu0 0
        %515 = vmatprep.subr.bf16.mxu0 0
        %516 = vmatpush2.bf16.xpose.msra.mxu0 0
        %517 = vmatprep.subr.bf16.mxu0 0
        %518 = vmatpush2.bf16.xpose.msra.mxu0 0
        %519 = vmatprep.subr.bf16.mxu0 0
        %520 = vmatpush2.bf16.xpose.msra.mxu0 0
        %521 = vmatprep.subr.bf16.mxu0 0
        %522 = vmatpush2.bf16.xpose.msra.mxu0 0
        %523 = vmatprep.subr.bf16.mxu0 0
        %524 = vmatpush2.bf16.xpose.msra.mxu0 0
        %525 = vmatprep.subr.bf16.mxu0 0
        %526 = vmatpush2.bf16.xpose.msra.mxu0 0
        %527 = vmatprep.mubr.bf16.mxu0 0
        %528 = vmatmul.mubr.bf16.gmra.mxu0 %v490
        %v529 = vpop.f32.mrf.mxu0
        %v530 = vadd.f32 0.0, %v529
        %v531 = vpop.f32.mrf.mxu0
        %v532 = vpop.f32.mrf.mxu0
        %v533 = vpop.f32.mrf.mxu0
        %534 = vdwg.mxu0
        %v535 = vsel %vm407, %v530, -inf
        %536 = vmax.xlane.f32.xlu0 %v535
        %v537 = vpop.xlane.xlu0 %536
        %v538 = vmax.f32 %v357, %v537
        %v539 = vsub.f32 %v357, %v538
        %v540 = vmul.f32 %v539, 1.442695
        %v541 = vpow.pop %v540
        %543 = vset.pattern.permute.xlu0 1
        %544 = vperm.xlu0 %543, %v538
        %v545 = vpop.permute.xlu0 %544
        %v547 = vsub.f32 %v530, %v545
        %v548 = vmul.f32 %v547, 1.442695
        %v549 = vpow.pop %v548
        %v550 = vmul.f32 %v541, %v358
        %v551 = vsel %vm407, %v549, 0.0
        %552 = vadd.xlane.f32.xlu0 %v551
        %v553 = vpop.xlane.xlu0 %552
        %v554 = vadd.f32 %v550, %v553
        %v555 = vpack.c.bf16 %v549, %v549
        %557 = vrot.lane.b32.xlu0 %v356, 124
        %v558 = vpop.permute.xlu0 %557
        %v560 = vsel %vm407, %v555, 0
        %v563 = vsel %vm432, %v558, 0
        %565 = vmatprep.subr.bf16.mxu0 0
        %566 = vmatpush1.bf16.msra.mxu0 0
        %567 = vmatprep.subr.bf16.mxu0 0
        %568 = vmatpush1.bf16.msra.mxu0 0
        %569 = vmatprep.subr.bf16.mxu0 0
        %570 = vmatpush1.bf16.msra.mxu0 0
        %571 = vmatprep.subr.bf16.mxu0 0
        %572 = vmatpush1.bf16.msra.mxu0 0
        %573 = vmatprep.subr.bf16.mxu0 0
        %574 = vmatpush1.bf16.msra.mxu0 0
        %575 = vmatprep.subr.bf16.mxu0 0
        %576 = vmatpush1.bf16.msra.mxu0 0
        %577 = vmatprep.subr.bf16.mxu0 0
        %578 = vmatpush1.bf16.msra.mxu0 0
        %579 = vmatprep.subr.bf16.mxu0 0
        %580 = vmatpush1.bf16.msra.mxu0 %v563
        %581 = vmatprep.subr.bf16.mxu0 0
        %582 = vmatpush2.bf16.msra.mxu0 0
        %583 = vmatprep.subr.bf16.mxu0 0
        %584 = vmatpush2.bf16.msra.mxu0 0
        %585 = vmatprep.subr.bf16.mxu0 0
        %586 = vmatpush2.bf16.msra.mxu0 0
        %587 = vmatprep.subr.bf16.mxu0 0
        %588 = vmatpush2.bf16.msra.mxu0 0
        %589 = vmatprep.subr.bf16.mxu0 0
        %590 = vmatpush2.bf16.msra.mxu0 0
        %591 = vmatprep.subr.bf16.mxu0 0
        %592 = vmatpush2.bf16.msra.mxu0 0
        %593 = vmatprep.subr.bf16.mxu0 0
        %594 = vmatpush2.bf16.msra.mxu0 0
        %595 = vmatprep.subr.bf16.mxu0 0
        %596 = vmatpush2.bf16.msra.mxu0 0
        %597 = vmatprep.mubr.bf16.mxu0 0
        %598 = vmatmul.mubr.bf16.gmra.mxu0 %v560
        %v599 = vpop.f32.mrf.mxu0
        %v600 = vadd.f32 0.0, %v599
        %v601 = vpop.f32.mrf.mxu0
        %v602 = vpop.f32.mrf.mxu0
        %v603 = vpop.f32.mrf.mxu0
        %604 = vdwg.mxu0
        %606 = vset.pattern.permute.xlu0 1
        %607 = vperm.xlu0 %606, %v541
        %v608 = vpop.permute.xlu0 %607
        %v610 = vmul.f32 %v608, %v359
        %612 = vrot.lane.b32.xlu0 %v600, 4
        %v613 = vpop.permute.xlu0 %612
        %v615 = vadd.f32 %v610, %v613
        %616 = vrot.lane.b32.xlu0 %v354, 120
        %v617 = vpop.permute.xlu0 %616
        %618 = vrot.lane.b32.xlu0 %v355, 120
        %v619 = vpop.permute.xlu0 %618
        %v621 = vsel %vm360, %v617, 0
        %v624 = vsel %vm360, %v619, 0
        %626 = vmatprep.subr.bf16.mxu0 0
        %627 = vmatpush1.bf16.xpose.msra.mxu0 0
        %628 = vmatprep.subr.bf16.mxu0 0
        %629 = vmatpush1.bf16.xpose.msra.mxu0 0
        %630 = vmatprep.subr.bf16.mxu0 0
        %631 = vmatpush1.bf16.xpose.msra.mxu0 0
        %632 = vmatprep.subr.bf16.mxu0 0
        %633 = vmatpush1.bf16.xpose.msra.mxu0 0
        %634 = vmatprep.subr.bf16.mxu0 0
        %635 = vmatpush1.bf16.xpose.msra.mxu0 0
        %636 = vmatprep.subr.bf16.mxu0 0
        %637 = vmatpush1.bf16.xpose.msra.mxu0 0
        %638 = vmatprep.subr.bf16.mxu0 0
        %639 = vmatpush1.bf16.xpose.msra.mxu0 0
        %640 = vmatprep.subr.bf16.mxu0 0
        %641 = vmatpush1.bf16.xpose.msra.mxu0 %v624
        %642 = vmatprep.subr.bf16.mxu0 0
        %643 = vmatpush2.bf16.xpose.msra.mxu0 0
        %644 = vmatprep.subr.bf16.mxu0 0
        %645 = vmatpush2.bf16.xpose.msra.mxu0 0
        %646 = vmatprep.subr.bf16.mxu0 0
        %647 = vmatpush2.bf16.xpose.msra.mxu0 0
        %648 = vmatprep.subr.bf16.mxu0 0
        %649 = vmatpush2.bf16.xpose.msra.mxu0 0
        %650 = vmatprep.subr.bf16.mxu0 0
        %651 = vmatpush2.bf16.xpose.msra.mxu0 0
        %652 = vmatprep.subr.bf16.mxu0 0
        %653 = vmatpush2.bf16.xpose.msra.mxu0 0
        %654 = vmatprep.subr.bf16.mxu0 0
        %655 = vmatpush2.bf16.xpose.msra.mxu0 0
        %656 = vmatprep.subr.bf16.mxu0 0
        %657 = vmatpush2.bf16.xpose.msra.mxu0 0
        %658 = vmatprep.mubr.bf16.mxu0 0
        %659 = vmatmul.mubr.bf16.gmra.mxu0 %v621
        %v660 = vpop.f32.mrf.mxu0
        %v661 = vadd.f32 0.0, %v660
        %v662 = vpop.f32.mrf.mxu0
        %v663 = vpop.f32.mrf.mxu0
        %v664 = vpop.f32.mrf.mxu0
        %665 = vdwg.mxu0
        %v666 = vsel %vm407, %v661, -inf
        %667 = vmax.xlane.f32.xlu0 %v666
        %v668 = vpop.xlane.xlu0 %667
        %v669 = vmax.f32 %v357, %v668
        %v670 = vsub.f32 %v357, %v669
        %v671 = vmul.f32 %v670, 1.442695
        %v672 = vpow.pop %v671
        %674 = vset.pattern.permute.xlu0 2
        %675 = vperm.xlu0 %674, %v669
        %v676 = vpop.permute.xlu0 %675
        %v678 = vsub.f32 %v661, %v676
        %v679 = vmul.f32 %v678, 1.442695
        %v680 = vpow.pop %v679
        %v681 = vmul.f32 %v672, %v358
        %v682 = vsel %vm407, %v680, 0.0
        %683 = vadd.xlane.f32.xlu0 %v682
        %v684 = vpop.xlane.xlu0 %683
        %v685 = vadd.f32 %v681, %v684
        %v686 = vpack.c.bf16 %v680, %v680
        %687 = vrot.lane.b32.xlu0 %v356, 120
        %v688 = vpop.permute.xlu0 %687
        %v690 = vsel %vm407, %v686, 0
        %v693 = vsel %vm432, %v688, 0
        %695 = vmatprep.subr.bf16.mxu0 0
        %696 = vmatpush1.bf16.msra.mxu0 0
        %697 = vmatprep.subr.bf16.mxu0 0
        %698 = vmatpush1.bf16.msra.mxu0 0
        %699 = vmatprep.subr.bf16.mxu0 0
        %700 = vmatpush1.bf16.msra.mxu0 0
        %701 = vmatprep.subr.bf16.mxu0 0
        %702 = vmatpush1.bf16.msra.mxu0 0
        %703 = vmatprep.subr.bf16.mxu0 0
        %704 = vmatpush1.bf16.msra.mxu0 0
        %705 = vmatprep.subr.bf16.mxu0 0
        %706 = vmatpush1.bf16.msra.mxu0 0
        %707 = vmatprep.subr.bf16.mxu0 0
        %708 = vmatpush1.bf16.msra.mxu0 0
        %709 = vmatprep.subr.bf16.mxu0 0
        %710 = vmatpush1.bf16.msra.mxu0 %v693
        %711 = vmatprep.subr.bf16.mxu0 0
        %712 = vmatpush2.bf16.msra.mxu0 0
        %713 = vmatprep.subr.bf16.mxu0 0
        %714 = vmatpush2.bf16.msra.mxu0 0
        %715 = vmatprep.subr.bf16.mxu0 0
        %716 = vmatpush2.bf16.msra.mxu0 0
        %717 = vmatprep.subr.bf16.mxu0 0
        %718 = vmatpush2.bf16.msra.mxu0 0
        %719 = vmatprep.subr.bf16.mxu0 0
        %720 = vmatpush2.bf16.msra.mxu0 0
        %721 = vmatprep.subr.bf16.mxu0 0
        %722 = vmatpush2.bf16.msra.mxu0 0
        %723 = vmatprep.subr.bf16.mxu0 0
        %724 = vmatpush2.bf16.msra.mxu0 0
        %725 = vmatprep.subr.bf16.mxu0 0
        %726 = vmatpush2.bf16.msra.mxu0 0
        %727 = vmatprep.mubr.bf16.mxu0 0
        %728 = vmatmul.mubr.bf16.gmra.mxu0 %v690
        %v729 = vpop.f32.mrf.mxu0
        %v730 = vadd.f32 0.0, %v729
        %v731 = vpop.f32.mrf.mxu0
        %v732 = vpop.f32.mrf.mxu0
        %v733 = vpop.f32.mrf.mxu0
        %734 = vdwg.mxu0
        %736 = vset.pattern.permute.xlu0 2
        %737 = vperm.xlu0 %736, %v672
        %v738 = vpop.permute.xlu0 %737
        %v740 = vmul.f32 %v738, %v359
        %742 = vrot.lane.b32.xlu0 %v730, 8
        %v743 = vpop.permute.xlu0 %742
        %v745 = vadd.f32 %v740, %v743
        %746 = vrot.lane.b32.xlu0 %v354, 116
        %v747 = vpop.permute.xlu0 %746
        %748 = vrot.lane.b32.xlu0 %v355, 116
        %v749 = vpop.permute.xlu0 %748
        %v751 = vsel %vm360, %v747, 0
        %v754 = vsel %vm360, %v749, 0
        %756 = vmatprep.subr.bf16.mxu0 0
        %757 = vmatpush1.bf16.xpose.msra.mxu0 0
        %758 = vmatprep.subr.bf16.mxu0 0
        %759 = vmatpush1.bf16.xpose.msra.mxu0 0
        %760 = vmatprep.subr.bf16.mxu0 0
        %761 = vmatpush1.bf16.xpose.msra.mxu0 0
        %762 = vmatprep.subr.bf16.mxu0 0
        %763 = vmatpush1.bf16.xpose.msra.mxu0 0
        %764 = vmatprep.subr.bf16.mxu0 0
        %765 = vmatpush1.bf16.xpose.msra.mxu0 0
        %766 = vmatprep.subr.bf16.mxu0 0
        %767 = vmatpush1.bf16.xpose.msra.mxu0 0
        %768 = vmatprep.subr.bf16.mxu0 0
        %769 = vmatpush1.bf16.xpose.msra.mxu0 0
        %770 = vmatprep.subr.bf16.mxu0 0
        %771 = vmatpush1.bf16.xpose.msra.mxu0 %v754
        %772 = vmatprep.subr.bf16.mxu0 0
        %773 = vmatpush2.bf16.xpose.msra.mxu0 0
        %774 = vmatprep.subr.bf16.mxu0 0
        %775 = vmatpush2.bf16.xpose.msra.mxu0 0
        %776 = vmatprep.subr.bf16.mxu0 0
        %777 = vmatpush2.bf16.xpose.msra.mxu0 0
        %778 = vmatprep.subr.bf16.mxu0 0
        %779 = vmatpush2.bf16.xpose.msra.mxu0 0
        %780 = vmatprep.subr.bf16.mxu0 0
        %781 = vmatpush2.bf16.xpose.msra.mxu0 0
        %782 = vmatprep.subr.bf16.mxu0 0
        %783 = vmatpush2.bf16.xpose.msra.mxu0 0
        %784 = vmatprep.subr.bf16.mxu0 0
        %785 = vmatpush2.bf16.xpose.msra.mxu0 0
        %786 = vmatprep.subr.bf16.mxu0 0
        %787 = vmatpush2.bf16.xpose.msra.mxu0 0
        %788 = vmatprep.mubr.bf16.mxu0 0
        %789 = vmatmul.mubr.bf16.gmra.mxu0 %v751
        %v790 = vpop.f32.mrf.mxu0
        %v791 = vadd.f32 0.0, %v790
        %v792 = vpop.f32.mrf.mxu0
        %v793 = vpop.f32.mrf.mxu0
        %v794 = vpop.f32.mrf.mxu0
        %795 = vdwg.mxu0
        %v796 = vsel %vm407, %v791, -inf
        %797 = vmax.xlane.f32.xlu0 %v796
        %v798 = vpop.xlane.xlu0 %797
        %v799 = vmax.f32 %v357, %v798
        %v800 = vsub.f32 %v357, %v799
        %v801 = vmul.f32 %v800, 1.442695
        %v802 = vpow.pop %v801
        %804 = vset.pattern.permute.xlu0 3
        %805 = vperm.xlu0 %804, %v799
        %v806 = vpop.permute.xlu0 %805
        %v808 = vsub.f32 %v791, %v806
        %v809 = vmul.f32 %v808, 1.442695
        %v810 = vpow.pop %v809
        %v811 = vmul.f32 %v802, %v358
        %v812 = vsel %vm407, %v810, 0.0
        %813 = vadd.xlane.f32.xlu0 %v812
        %v814 = vpop.xlane.xlu0 %813
        %v815 = vadd.f32 %v811, %v814
        %v816 = vpack.c.bf16 %v810, %v810
        %817 = vrot.lane.b32.xlu0 %v356, 116
        %v818 = vpop.permute.xlu0 %817
        %v820 = vsel %vm407, %v816, 0
        %v823 = vsel %vm432, %v818, 0
        %825 = vmatprep.subr.bf16.mxu0 0
        %826 = vmatpush1.bf16.msra.mxu0 0
        %827 = vmatprep.subr.bf16.mxu0 0
        %828 = vmatpush1.bf16.msra.mxu0 0
        %829 = vmatprep.subr.bf16.mxu0 0
        %830 = vmatpush1.bf16.msra.mxu0 0
        %831 = vmatprep.subr.bf16.mxu0 0
        %832 = vmatpush1.bf16.msra.mxu0 0
        %833 = vmatprep.subr.bf16.mxu0 0
        %834 = vmatpush1.bf16.msra.mxu0 0
        %835 = vmatprep.subr.bf16.mxu0 0
        %836 = vmatpush1.bf16.msra.mxu0 0
        %837 = vmatprep.subr.bf16.mxu0 0
        %838 = vmatpush1.bf16.msra.mxu0 0
        %839 = vmatprep.subr.bf16.mxu0 0
        %840 = vmatpush1.bf16.msra.mxu0 %v823
        %841 = vmatprep.subr.bf16.mxu0 0
        %842 = vmatpush2.bf16.msra.mxu0 0
        %843 = vmatprep.subr.bf16.mxu0 0
        %844 = vmatpush2.bf16.msra.mxu0 0
        %845 = vmatprep.subr.bf16.mxu0 0
        %846 = vmatpush2.bf16.msra.mxu0 0
        %847 = vmatprep.subr.bf16.mxu0 0
        %848 = vmatpush2.bf16.msra.mxu0 0
        %849 = vmatprep.subr.bf16.mxu0 0
        %850 = vmatpush2.bf16.msra.mxu0 0
        %851 = vmatprep.subr.bf16.mxu0 0
        %852 = vmatpush2.bf16.msra.mxu0 0
        %853 = vmatprep.subr.bf16.mxu0 0
        %854 = vmatpush2.bf16.msra.mxu0 0
        %855 = vmatprep.subr.bf16.mxu0 0
        %856 = vmatpush2.bf16.msra.mxu0 0
        %857 = vmatprep.mubr.bf16.mxu0 0
        %858 = vmatmul.mubr.bf16.gmra.mxu0 %v820
        %v859 = vpop.f32.mrf.mxu0
        %v860 = vadd.f32 0.0, %v859
        %v861 = vpop.f32.mrf.mxu0
        %v862 = vpop.f32.mrf.mxu0
        %v863 = vpop.f32.mrf.mxu0
        %864 = vdwg.mxu0
        %866 = vset.pattern.permute.xlu0 3
        %867 = vperm.xlu0 %866, %v802
        %v868 = vpop.permute.xlu0 %867
        %v870 = vmul.f32 %v868, %v359
        %872 = vrot.lane.b32.xlu0 %v860, 12
        %v873 = vpop.permute.xlu0 %872
        %v875 = vadd.f32 %v870, %v873
        %876 = vrot.lane.b32.xlu0 %v354, 112
        %v877 = vpop.permute.xlu0 %876
        %878 = vrot.lane.b32.xlu0 %v355, 112
        %v879 = vpop.permute.xlu0 %878
        %v881 = vsel %vm360, %v877, 0
        %v884 = vsel %vm360, %v879, 0
        %886 = vmatprep.subr.bf16.mxu0 0
        %887 = vmatpush1.bf16.xpose.msra.mxu0 0
        %888 = vmatprep.subr.bf16.mxu0 0
        %889 = vmatpush1.bf16.xpose.msra.mxu0 0
        %890 = vmatprep.subr.bf16.mxu0 0
        %891 = vmatpush1.bf16.xpose.msra.mxu0 0
        %892 = vmatprep.subr.bf16.mxu0 0
        %893 = vmatpush1.bf16.xpose.msra.mxu0 0
        %894 = vmatprep.subr.bf16.mxu0 0
        %895 = vmatpush1.bf16.xpose.msra.mxu0 0
        %896 = vmatprep.subr.bf16.mxu0 0
        %897 = vmatpush1.bf16.xpose.msra.mxu0 0
        %898 = vmatprep.subr.bf16.mxu0 0
        %899 = vmatpush1.bf16.xpose.msra.mxu0 0
        %900 = vmatprep.subr.bf16.mxu0 0
        %901 = vmatpush1.bf16.xpose.msra.mxu0 %v884
        %902 = vmatprep.subr.bf16.mxu0 0
        %903 = vmatpush2.bf16.xpose.msra.mxu0 0
        %904 = vmatprep.subr.bf16.mxu0 0
        %905 = vmatpush2.bf16.xpose.msra.mxu0 0
        %906 = vmatprep.subr.bf16.mxu0 0
        %907 = vmatpush2.bf16.xpose.msra.mxu0 0
        %908 = vmatprep.subr.bf16.mxu0 0
        %909 = vmatpush2.bf16.xpose.msra.mxu0 0
        %910 = vmatprep.subr.bf16.mxu0 0
        %911 = vmatpush2.bf16.xpose.msra.mxu0 0
        %912 = vmatprep.subr.bf16.mxu0 0
        %913 = vmatpush2.bf16.xpose.msra.mxu0 0
        %914 = vmatprep.subr.bf16.mxu0 0
        %915 = vmatpush2.bf16.xpose.msra.mxu0 0
        %916 = vmatprep.subr.bf16.mxu0 0
        %917 = vmatpush2.bf16.xpose.msra.mxu0 0
        %918 = vmatprep.mubr.bf16.mxu0 0
        %919 = vmatmul.mubr.bf16.gmra.mxu0 %v881
        %v920 = vpop.f32.mrf.mxu0
        %v921 = vadd.f32 0.0, %v920
        %v922 = vpop.f32.mrf.mxu0
        %v923 = vpop.f32.mrf.mxu0
        %v924 = vpop.f32.mrf.mxu0
        %925 = vdwg.mxu0
        %v926 = vsel %vm407, %v921, -inf
        %927 = vmax.xlane.f32.xlu0 %v926
        %v928 = vpop.xlane.xlu0 %927
        %v929 = vmax.f32 %v357, %v928
        %v930 = vsub.f32 %v357, %v929
        %v931 = vmul.f32 %v930, 1.442695
        %v932 = vpow.pop %v931
        %934 = vset.pattern.permute.xlu0 4
        %935 = vperm.xlu0 %934, %v929
        %v936 = vpop.permute.xlu0 %935
        %v938 = vsub.f32 %v921, %v936
        %v939 = vmul.f32 %v938, 1.442695
        %v940 = vpow.pop %v939
        %v941 = vmul.f32 %v932, %v358
        %v942 = vsel %vm407, %v940, 0.0
        %943 = vadd.xlane.f32.xlu0 %v942
        %v944 = vpop.xlane.xlu0 %943
        %v945 = vadd.f32 %v941, %v944
        %v946 = vpack.c.bf16 %v940, %v940
        %947 = vrot.lane.b32.xlu0 %v356, 112
        %v948 = vpop.permute.xlu0 %947
        %v950 = vsel %vm407, %v946, 0
        %v953 = vsel %vm432, %v948, 0
        %955 = vmatprep.subr.bf16.mxu0 0
        %956 = vmatpush1.bf16.msra.mxu0 0
        %957 = vmatprep.subr.bf16.mxu0 0
        %958 = vmatpush1.bf16.msra.mxu0 0
        %959 = vmatprep.subr.bf16.mxu0 0
        %960 = vmatpush1.bf16.msra.mxu0 0
        %961 = vmatprep.subr.bf16.mxu0 0
        %962 = vmatpush1.bf16.msra.mxu0 0
        %963 = vmatprep.subr.bf16.mxu0 0
        %964 = vmatpush1.bf16.msra.mxu0 0
        %965 = vmatprep.subr.bf16.mxu0 0
        %966 = vmatpush1.bf16.msra.mxu0 0
        %967 = vmatprep.subr.bf16.mxu0 0
        %968 = vmatpush1.bf16.msra.mxu0 0
        %969 = vmatprep.subr.bf16.mxu0 0
        %970 = vmatpush1.bf16.msra.mxu0 %v953
        %971 = vmatprep.subr.bf16.mxu0 0
        %972 = vmatpush2.bf16.msra.mxu0 0
        %973 = vmatprep.subr.bf16.mxu0 0
        %974 = vmatpush2.bf16.msra.mxu0 0
        %975 = vmatprep.subr.bf16.mxu0 0
        %976 = vmatpush2.bf16.msra.mxu0 0
        %977 = vmatprep.subr.bf16.mxu0 0
        %978 = vmatpush2.bf16.msra.mxu0 0
        %979 = vmatprep.subr.bf16.mxu0 0
        %980 = vmatpush2.bf16.msra.mxu0 0
        %981 = vmatprep.subr.bf16.mxu0 0
        %982 = vmatpush2.bf16.msra.mxu0 0
        %983 = vmatprep.subr.bf16.mxu0 0
        %984 = vmatpush2.bf16.msra.mxu0 0
        %985 = vmatprep.subr.bf16.mxu0 0
        %986 = vmatpush2.bf16.msra.mxu0 0
        %987 = vmatprep.mubr.bf16.mxu0 0
        %988 = vmatmul.mubr.bf16.gmra.mxu0 %v950
        %v989 = vpop.f32.mrf.mxu0
        %v990 = vadd.f32 0.0, %v989
        %v991 = vpop.f32.mrf.mxu0
        %v992 = vpop.f32.mrf.mxu0
        %v993 = vpop.f32.mrf.mxu0
        %994 = vdwg.mxu0
        %996 = vset.pattern.permute.xlu0 4
        %997 = vperm.xlu0 %996, %v932
        %v998 = vpop.permute.xlu0 %997
        %v1000 = vmul.f32 %v998, %v359
        %1002 = vrot.lane.b32.xlu0 %v990, 16
        %v1003 = vpop.permute.xlu0 %1002
        %v1005 = vadd.f32 %v1000, %v1003
        %1006 = vrot.lane.b32.xlu0 %v354, 108
        %v1007 = vpop.permute.xlu0 %1006
        %1008 = vrot.lane.b32.xlu0 %v355, 108
        %v1009 = vpop.permute.xlu0 %1008
        %v1011 = vsel %vm360, %v1007, 0
        %v1014 = vsel %vm360, %v1009, 0
        %1016 = vmatprep.subr.bf16.mxu0 0
        %1017 = vmatpush1.bf16.xpose.msra.mxu0 0
        %1018 = vmatprep.subr.bf16.mxu0 0
        %1019 = vmatpush1.bf16.xpose.msra.mxu0 0
        %1020 = vmatprep.subr.bf16.mxu0 0
        %1021 = vmatpush1.bf16.xpose.msra.mxu0 0
        %1022 = vmatprep.subr.bf16.mxu0 0
        %1023 = vmatpush1.bf16.xpose.msra.mxu0 0
        %1024 = vmatprep.subr.bf16.mxu0 0
        %1025 = vmatpush1.bf16.xpose.msra.mxu0 0
        %1026 = vmatprep.subr.bf16.mxu0 0
        %1027 = vmatpush1.bf16.xpose.msra.mxu0 0
        %1028 = vmatprep.subr.bf16.mxu0 0
        %1029 = vmatpush1.bf16.xpose.msra.mxu0 0
        %1030 = vmatprep.subr.bf16.mxu0 0
        %1031 = vmatpush1.bf16.xpose.msra.mxu0 %v1014
        %1032 = vmatprep.subr.bf16.mxu0 0
        %1033 = vmatpush2.bf16.xpose.msra.mxu0 0
        %1034 = vmatprep.subr.bf16.mxu0 0
        %1035 = vmatpush2.bf16.xpose.msra.mxu0 0
        %1036 = vmatprep.subr.bf16.mxu0 0
        %1037 = vmatpush2.bf16.xpose.msra.mxu0 0
        %1038 = vmatprep.subr.bf16.mxu0 0
        %1039 = vmatpush2.bf16.xpose.msra.mxu0 0
        %1040 = vmatprep.subr.bf16.mxu0 0
        %1041 = vmatpush2.bf16.xpose.msra.mxu0 0
        %1042 = vmatprep.subr.bf16.mxu0 0
        %1043 = vmatpush2.bf16.xpose.msra.mxu0 0
        %1044 = vmatprep.subr.bf16.mxu0 0
        %1045 = vmatpush2.bf16.xpose.msra.mxu0 0
        %1046 = vmatprep.subr.bf16.mxu0 0
        %1047 = vmatpush2.bf16.xpose.msra.mxu0 0
        %1048 = vmatprep.mubr.bf16.mxu0 0
        %1049 = vmatmul.mubr.bf16.gmra.mxu0 %v1011
        %v1050 = vpop.f32.mrf.mxu0
        %v1051 = vadd.f32 0.0, %v1050
        %v1052 = vpop.f32.mrf.mxu0
        %v1053 = vpop.f32.mrf.mxu0
        %v1054 = vpop.f32.mrf.mxu0
        %1055 = vdwg.mxu0
        %v1056 = vsel %vm407, %v1051, -inf
        %1057 = vmax.xlane.f32.xlu0 %v1056
        %v1058 = vpop.xlane.xlu0 %1057
        %v1059 = vmax.f32 %v357, %v1058
        %v1060 = vsub.f32 %v357, %v1059
        %v1061 = vmul.f32 %v1060, 1.442695
        %v1062 = vpow.pop %v1061
        %1064 = vset.pattern.permute.xlu0 5
        %1065 = vperm.xlu0 %1064, %v1059
        %v1066 = vpop.permute.xlu0 %1065
        %v1068 = vsub.f32 %v1051, %v1066
        %v1069 = vmul.f32 %v1068, 1.442695
        %v1070 = vpow.pop %v1069
        %v1071 = vmul.f32 %v1062, %v358
        %v1072 = vsel %vm407, %v1070, 0.0
        %1073 = vadd.xlane.f32.xlu0 %v1072
        %v1074 = vpop.xlane.xlu0 %1073
        %v1075 = vadd.f32 %v1071, %v1074
        %v1076 = vpack.c.bf16 %v1070, %v1070
        %1077 = vrot.lane.b32.xlu0 %v356, 108
        %v1078 = vpop.permute.xlu0 %1077
        %v1080 = vsel %vm407, %v1076, 0
        %v1083 = vsel %vm432, %v1078, 0
        %1085 = vmatprep.subr.bf16.mxu0 0
        %1086 = vmatpush1.bf16.msra.mxu0 0
        %1087 = vmatprep.subr.bf16.mxu0 0
        %1088 = vmatpush1.bf16.msra.mxu0 0
        %1089 = vmatprep.subr.bf16.mxu0 0
        %1090 = vmatpush1.bf16.msra.mxu0 0
        %1091 = vmatprep.subr.bf16.mxu0 0
        %1092 = vmatpush1.bf16.msra.mxu0 0
        %1093 = vmatprep.subr.bf16.mxu0 0
        %1094 = vmatpush1.bf16.msra.mxu0 0
        %1095 = vmatprep.subr.bf16.mxu0 0
        %1096 = vmatpush1.bf16.msra.mxu0 0
        %1097 = vmatprep.subr.bf16.mxu0 0
        %1098 = vmatpush1.bf16.msra.mxu0 0
        %1099 = vmatprep.subr.bf16.mxu0 0
        %1100 = vmatpush1.bf16.msra.mxu0 %v1083
        %1101 = vmatprep.subr.bf16.mxu0 0
        %1102 = vmatpush2.bf16.msra.mxu0 0
        %1103 = vmatprep.subr.bf16.mxu0 0
        %1104 = vmatpush2.bf16.msra.mxu0 0
        %1105 = vmatprep.subr.bf16.mxu0 0
        %1106 = vmatpush2.bf16.msra.mxu0 0
        %1107 = vmatprep.subr.bf16.mxu0 0
        %1108 = vmatpush2.bf16.msra.mxu0 0
        %1109 = vmatprep.subr.bf16.mxu0 0
        %1110 = vmatpush2.bf16.msra.mxu0 0
        %1111 = vmatprep.subr.bf16.mxu0 0
        %1112 = vmatpush2.bf16.msra.mxu0 0
        %1113 = vmatprep.subr.bf16.mxu0 0
        %1114 = vmatpush2.bf16.msra.mxu0 0
        %1115 = vmatprep.subr.bf16.mxu0 0
        %1116 = vmatpush2.bf16.msra.mxu0 0
        %1117 = vmatprep.mubr.bf16.mxu0 0
        %1118 = vmatmul.mubr.bf16.gmra.mxu0 %v1080
        %v1119 = vpop.f32.mrf.mxu0
        %v1120 = vadd.f32 0.0, %v1119
        %v1121 = vpop.f32.mrf.mxu0
        %v1122 = vpop.f32.mrf.mxu0
        %v1123 = vpop.f32.mrf.mxu0
        %1124 = vdwg.mxu0
        %1126 = vset.pattern.permute.xlu0 5
        %1127 = vperm.xlu0 %1126, %v1062
        %v1128 = vpop.permute.xlu0 %1127
        %v1130 = vmul.f32 %v1128, %v359
        %1132 = vrot.lane.b32.xlu0 %v1120, 20
        %v1133 = vpop.permute.xlu0 %1132
        %v1135 = vadd.f32 %v1130, %v1133
        %1136 = vrot.lane.b32.xlu0 %v354, 104
        %v1137 = vpop.permute.xlu0 %1136
        %1138 = vrot.lane.b32.xlu0 %v355, 104
        %v1139 = vpop.permute.xlu0 %1138
        %v1141 = vsel %vm360, %v1137, 0
        %v1144 = vsel %vm360, %v1139, 0
        %1146 = vmatprep.subr.bf16.mxu0 0
        %1147 = vmatpush1.bf16.xpose.msra.mxu0 0
        %1148 = vmatprep.subr.bf16.mxu0 0
        %1149 = vmatpush1.bf16.xpose.msra.mxu0 0
        %1150 = vmatprep.subr.bf16.mxu0 0
        %1151 = vmatpush1.bf16.xpose.msra.mxu0 0
        %1152 = vmatprep.subr.bf16.mxu0 0
        %1153 = vmatpush1.bf16.xpose.msra.mxu0 0
        %1154 = vmatprep.subr.bf16.mxu0 0
        %1155 = vmatpush1.bf16.xpose.msra.mxu0 0
        %1156 = vmatprep.subr.bf16.mxu0 0
        %1157 = vmatpush1.bf16.xpose.msra.mxu0 0
        %1158 = vmatprep.subr.bf16.mxu0 0
        %1159 = vmatpush1.bf16.xpose.msra.mxu0 0
        %1160 = vmatprep.subr.bf16.mxu0 0
        %1161 = vmatpush1.bf16.xpose.msra.mxu0 %v1144
        %1162 = vmatprep.subr.bf16.mxu0 0
        %1163 = vmatpush2.bf16.xpose.msra.mxu0 0
        %1164 = vmatprep.subr.bf16.mxu0 0
        %1165 = vmatpush2.bf16.xpose.msra.mxu0 0
        %1166 = vmatprep.subr.bf16.mxu0 0
        %1167 = vmatpush2.bf16.xpose.msra.mxu0 0
        %1168 = vmatprep.subr.bf16.mxu0 0
        %1169 = vmatpush2.bf16.xpose.msra.mxu0 0
        %1170 = vmatprep.subr.bf16.mxu0 0
        %1171 = vmatpush2.bf16.xpose.msra.mxu0 0
        %1172 = vmatprep.subr.bf16.mxu0 0
        %1173 = vmatpush2.bf16.xpose.msra.mxu0 0
        %1174 = vmatprep.subr.bf16.mxu0 0
        %1175 = vmatpush2.bf16.xpose.msra.mxu0 0
        %1176 = vmatprep.subr.bf16.mxu0 0
        %1177 = vmatpush2.bf16.xpose.msra.mxu0 0
        %1178 = vmatprep.mubr.bf16.mxu0 0
        %1179 = vmatmul.mubr.bf16.gmra.mxu0 %v1141
        %v1180 = vpop.f32.mrf.mxu0
        %v1181 = vadd.f32 0.0, %v1180
        %v1182 = vpop.f32.mrf.mxu0
        %v1183 = vpop.f32.mrf.mxu0
        %v1184 = vpop.f32.mrf.mxu0
        %1185 = vdwg.mxu0
        %v1186 = vsel %vm407, %v1181, -inf
        %1187 = vmax.xlane.f32.xlu0 %v1186
        %v1188 = vpop.xlane.xlu0 %1187
        %v1189 = vmax.f32 %v357, %v1188
        %v1190 = vsub.f32 %v357, %v1189
        %v1191 = vmul.f32 %v1190, 1.442695
        %v1192 = vpow.pop %v1191
        %1194 = vset.pattern.permute.xlu0 6
        %1195 = vperm.xlu0 %1194, %v1189
        %v1196 = vpop.permute.xlu0 %1195
        %v1198 = vsub.f32 %v1181, %v1196
        %v1199 = vmul.f32 %v1198, 1.442695
        %v1200 = vpow.pop %v1199
        %v1201 = vmul.f32 %v1192, %v358
        %v1202 = vsel %vm407, %v1200, 0.0
        %1203 = vadd.xlane.f32.xlu0 %v1202
        %v1204 = vpop.xlane.xlu0 %1203
        %v1205 = vadd.f32 %v1201, %v1204
        %v1206 = vpack.c.bf16 %v1200, %v1200
        %1207 = vrot.lane.b32.xlu0 %v356, 104
        %v1208 = vpop.permute.xlu0 %1207
        %v1210 = vsel %vm407, %v1206, 0
        %v1213 = vsel %vm432, %v1208, 0
        %1215 = vmatprep.subr.bf16.mxu0 0
        %1216 = vmatpush1.bf16.msra.mxu0 0
        %1217 = vmatprep.subr.bf16.mxu0 0
        %1218 = vmatpush1.bf16.msra.mxu0 0
        %1219 = vmatprep.subr.bf16.mxu0 0
        %1220 = vmatpush1.bf16.msra.mxu0 0
        %1221 = vmatprep.subr.bf16.mxu0 0
        %1222 = vmatpush1.bf16.msra.mxu0 0
        %1223 = vmatprep.subr.bf16.mxu0 0
        %1224 = vmatpush1.bf16.msra.mxu0 0
        %1225 = vmatprep.subr.bf16.mxu0 0
        %1226 = vmatpush1.bf16.msra.mxu0 0
        %1227 = vmatprep.subr.bf16.mxu0 0
        %1228 = vmatpush1.bf16.msra.mxu0 0
        %1229 = vmatprep.subr.bf16.mxu0 0
        %1230 = vmatpush1.bf16.msra.mxu0 %v1213
        %1231 = vmatprep.subr.bf16.mxu0 0
        %1232 = vmatpush2.bf16.msra.mxu0 0
        %1233 = vmatprep.subr.bf16.mxu0 0
        %1234 = vmatpush2.bf16.msra.mxu0 0
        %1235 = vmatprep.subr.bf16.mxu0 0
        %1236 = vmatpush2.bf16.msra.mxu0 0
        %1237 = vmatprep.subr.bf16.mxu0 0
        %1238 = vmatpush2.bf16.msra.mxu0 0
        %1239 = vmatprep.subr.bf16.mxu0 0
        %1240 = vmatpush2.bf16.msra.mxu0 0
        %1241 = vmatprep.subr.bf16.mxu0 0
        %1242 = vmatpush2.bf16.msra.mxu0 0
        %1243 = vmatprep.subr.bf16.mxu0 0
        %1244 = vmatpush2.bf16.msra.mxu0 0
        %1245 = vmatprep.subr.bf16.mxu0 0
        %1246 = vmatpush2.bf16.msra.mxu0 0
        %1247 = vmatprep.mubr.bf16.mxu0 0
        %1248 = vmatmul.mubr.bf16.gmra.mxu0 %v1210
        %v1249 = vpop.f32.mrf.mxu0
        %v1250 = vadd.f32 0.0, %v1249
        %v1251 = vpop.f32.mrf.mxu0
        %v1252 = vpop.f32.mrf.mxu0
        %v1253 = vpop.f32.mrf.mxu0
        %1254 = vdwg.mxu0
        %1256 = vset.pattern.permute.xlu0 6
        %1257 = vperm.xlu0 %1256, %v1192
        %v1258 = vpop.permute.xlu0 %1257
        %v1260 = vmul.f32 %v1258, %v359
        %1262 = vrot.lane.b32.xlu0 %v1250, 24
        %v1263 = vpop.permute.xlu0 %1262
        %v1265 = vadd.f32 %v1260, %v1263
        %1266 = vrot.lane.b32.xlu0 %v354, 100
        %v1267 = vpop.permute.xlu0 %1266
        %1268 = vrot.lane.b32.xlu0 %v355, 100
        %v1269 = vpop.permute.xlu0 %1268
        %v1271 = vsel %vm360, %v1267, 0
        %v1274 = vsel %vm360, %v1269, 0
        %1276 = vmatprep.subr.bf16.mxu0 0
        %1277 = vmatpush1.bf16.xpose.msra.mxu0 0
        %1278 = vmatprep.subr.bf16.mxu0 0
        %1279 = vmatpush1.bf16.xpose.msra.mxu0 0
        %1280 = vmatprep.subr.bf16.mxu0 0
        %1281 = vmatpush1.bf16.xpose.msra.mxu0 0
        %1282 = vmatprep.subr.bf16.mxu0 0
        %1283 = vmatpush1.bf16.xpose.msra.mxu0 0
        %1284 = vmatprep.subr.bf16.mxu0 0
        %1285 = vmatpush1.bf16.xpose.msra.mxu0 0
        %1286 = vmatprep.subr.bf16.mxu0 0
        %1287 = vmatpush1.bf16.xpose.msra.mxu0 0
        %1288 = vmatprep.subr.bf16.mxu0 0
        %1289 = vmatpush1.bf16.xpose.msra.mxu0 0
        %1290 = vmatprep.subr.bf16.mxu0 0
        %1291 = vmatpush1.bf16.xpose.msra.mxu0 %v1274
        %1292 = vmatprep.subr.bf16.mxu0 0
        %1293 = vmatpush2.bf16.xpose.msra.mxu0 0
        %1294 = vmatprep.subr.bf16.mxu0 0
        %1295 = vmatpush2.bf16.xpose.msra.mxu0 0
        %1296 = vmatprep.subr.bf16.mxu0 0
        %1297 = vmatpush2.bf16.xpose.msra.mxu0 0
        %1298 = vmatprep.subr.bf16.mxu0 0
        %1299 = vmatpush2.bf16.xpose.msra.mxu0 0
        %1300 = vmatprep.subr.bf16.mxu0 0
        %1301 = vmatpush2.bf16.xpose.msra.mxu0 0
        %1302 = vmatprep.subr.bf16.mxu0 0
        %1303 = vmatpush2.bf16.xpose.msra.mxu0 0
        %1304 = vmatprep.subr.bf16.mxu0 0
        %1305 = vmatpush2.bf16.xpose.msra.mxu0 0
        %1306 = vmatprep.subr.bf16.mxu0 0
        %1307 = vmatpush2.bf16.xpose.msra.mxu0 0
        %1308 = vmatprep.mubr.bf16.mxu0 0
        %1309 = vmatmul.mubr.bf16.gmra.mxu0 %v1271
        %v1310 = vpop.f32.mrf.mxu0
        %v1311 = vadd.f32 0.0, %v1310
        %v1312 = vpop.f32.mrf.mxu0
        %v1313 = vpop.f32.mrf.mxu0
        %v1314 = vpop.f32.mrf.mxu0
        %1315 = vdwg.mxu0
        %v1316 = vsel %vm407, %v1311, -inf
        %1317 = vmax.xlane.f32.xlu0 %v1316
        %v1318 = vpop.xlane.xlu0 %1317
        %v1319 = vmax.f32 %v357, %v1318
        %v1320 = vsub.f32 %v357, %v1319
        %v1321 = vmul.f32 %v1320, 1.442695
        %v1322 = vpow.pop %v1321
        %1324 = vset.pattern.permute.xlu0 7
        %1325 = vperm.xlu0 %1324, %v1319
        %v1326 = vpop.permute.xlu0 %1325
        %v1328 = vsub.f32 %v1311, %v1326
        %v1329 = vmul.f32 %v1328, 1.442695
        %v1330 = vpow.pop %v1329
        %v1331 = vmul.f32 %v1322, %v358
        %v1332 = vsel %vm407, %v1330, 0.0
        %1333 = vadd.xlane.f32.xlu0 %v1332
        %v1334 = vpop.xlane.xlu0 %1333
        %v1335 = vadd.f32 %v1331, %v1334
        %v1336 = vpack.c.bf16 %v1330, %v1330
        %1337 = vrot.lane.b32.xlu0 %v356, 100
        %v1338 = vpop.permute.xlu0 %1337
        %v1340 = vsel %vm407, %v1336, 0
        %v1343 = vsel %vm432, %v1338, 0
        %1345 = vmatprep.subr.bf16.mxu0 0
        %1346 = vmatpush1.bf16.msra.mxu0 0
        %1347 = vmatprep.subr.bf16.mxu0 0
        %1348 = vmatpush1.bf16.msra.mxu0 0
        %1349 = vmatprep.subr.bf16.mxu0 0
        %1350 = vmatpush1.bf16.msra.mxu0 0
        %1351 = vmatprep.subr.bf16.mxu0 0
        %1352 = vmatpush1.bf16.msra.mxu0 0
        %1353 = vmatprep.subr.bf16.mxu0 0
        %1354 = vmatpush1.bf16.msra.mxu0 0
        %1355 = vmatprep.subr.bf16.mxu0 0
        %1356 = vmatpush1.bf16.msra.mxu0 0
        %1357 = vmatprep.subr.bf16.mxu0 0
        %1358 = vmatpush1.bf16.msra.mxu0 0
        %1359 = vmatprep.subr.bf16.mxu0 0
        %1360 = vmatpush1.bf16.msra.mxu0 %v1343
        %1361 = vmatprep.subr.bf16.mxu0 0
        %1362 = vmatpush2.bf16.msra.mxu0 0
        %1363 = vmatprep.subr.bf16.mxu0 0
        %1364 = vmatpush2.bf16.msra.mxu0 0
        %1365 = vmatprep.subr.bf16.mxu0 0
        %1366 = vmatpush2.bf16.msra.mxu0 0
        %1367 = vmatprep.subr.bf16.mxu0 0
        %1368 = vmatpush2.bf16.msra.mxu0 0
        %1369 = vmatprep.subr.bf16.mxu0 0
        %1370 = vmatpush2.bf16.msra.mxu0 0
        %1371 = vmatprep.subr.bf16.mxu0 0
        %1372 = vmatpush2.bf16.msra.mxu0 0
        %1373 = vmatprep.subr.bf16.mxu0 0
        %1374 = vmatpush2.bf16.msra.mxu0 0
        %1375 = vmatprep.subr.bf16.mxu0 0
        %1376 = vmatpush2.bf16.msra.mxu0 0
        %1377 = vmatprep.mubr.bf16.mxu0 0
        %1378 = vmatmul.mubr.bf16.gmra.mxu0 %v1340
        %v1379 = vpop.f32.mrf.mxu0
        %v1380 = vadd.f32 0.0, %v1379
        %v1381 = vpop.f32.mrf.mxu0
        %v1382 = vpop.f32.mrf.mxu0
        %v1383 = vpop.f32.mrf.mxu0
        %1384 = vdwg.mxu0
        %1386 = vset.pattern.permute.xlu0 7
        %1387 = vperm.xlu0 %1386, %v1322
        %v1388 = vpop.permute.xlu0 %1387
        %v1390 = vmul.f32 %v1388, %v359
        %1392 = vrot.lane.b32.xlu0 %v1380, 28
        %v1393 = vpop.permute.xlu0 %1392
        %v1395 = vadd.f32 %v1390, %v1393
        %vm1396 = vcmask 7168
        %v1397 = vsel %vm1396, %v411, %v538
        %vm1398 = vcmask 15360
        %v1399 = vsel %vm1398, %v1397, %v669
        %vm1400 = vcmask 23552
        %v1401 = vsel %vm1400, %v1399, %v799
        %v1402 = vsel %vm360, %v1401, %v929
        %vm1403 = vcmask 39936
        %v1404 = vsel %vm1403, %v1402, %v1059
        %vm1405 = vcmask 48128
        %v1406 = vsel %vm1405, %v1404, %v1189
        %vm1407 = vcmask 56320
        %v1408 = vsel %vm1407, %v1406, %v1319
        %1409 = vst.msk [vmem:[#allocation2] sm:$0xff] %vm407, %v1408
        %v1410 = vsel %vm1396, %v427, %v554
        %v1411 = vsel %vm1398, %v1410, %v685
        %v1412 = vsel %vm1400, %v1411, %v815
        %v1413 = vsel %vm360, %v1412, %v945
        %v1414 = vsel %vm1403, %v1413, %v1075
        %v1415 = vsel %vm1405, %v1414, %v1205
        %v1416 = vsel %vm1407, %v1415, %v1335
        %1417 = vst.msk [vmem:[#allocation3] sm:$0xff] %vm407, %v1416
        %v1418 = vsel %vm360, %v482, %v615
        %v1419 = vsel %vm407, %v1418, %v745
        %vm1420 = vcmask 97280
        %v1421 = vsel %vm1420, %v1419, %v875
        %vm1422 = vcmask 130048
        %v1423 = vsel %vm1422, %v1421, %v1005
        %vm1424 = vcmask 162816
        %v1425 = vsel %vm1424, %v1423, %v1135
        %vm1426 = vcmask 195584
        %v1427 = vsel %vm1426, %v1425, %v1265
        %vm1428 = vcmask 228352
        %v1429 = vsel %vm1428, %v1427, %v1395
        %vm1430 = vcmask 261120
        %1431 = vst.msk [vmem:[#allocation4] sm:$0xff] %vm1430, %v1429
        // Predicated region
        $region57: #{tpu_custom_call.1} parent=39 // pred_check
          %p1432 = pneg %p342
        $region58: #{tpu_custom_call.1} parent=39 // pred_check_branch
          %1434 = sbr.rel (%p1432) target = $region60
        $region59: #{tpu_custom_call.1} parent=39 // pred_region
          %v1435 = vld [vmem:[#allocation3] sm:$0xff]
          %v1436 = vrcp.pop %v1435
          %v1437 = vld [vmem:[#allocation4] sm:$0xff]
          %1439 = vset.pattern.permute.xlu0 0
          %1440 = vperm.xlu0 %1439, %v1436
          %v1441 = vpop.permute.xlu0 %1440
          %v1443 = vmul.f32 %v1437, %v1441
          %1444 = vset.pattern.permute.xlu0 1
          %1445 = vperm.xlu0 %1444, %v1436
          %v1446 = vpop.permute.xlu0 %1445
          %v1448 = vmul.f32 %v1437, %v1446
          %1449 = vset.pattern.permute.xlu0 2
          %1450 = vperm.xlu0 %1449, %v1436
          %v1451 = vpop.permute.xlu0 %1450
          %v1453 = vmul.f32 %v1437, %v1451
          %1454 = vset.pattern.permute.xlu0 3
          %1455 = vperm.xlu0 %1454, %v1436
          %v1456 = vpop.permute.xlu0 %1455
          %v1458 = vmul.f32 %v1437, %v1456
          %1459 = vset.pattern.permute.xlu0 4
          %1460 = vperm.xlu0 %1459, %v1436
          %v1461 = vpop.permute.xlu0 %1460
          %v1463 = vmul.f32 %v1437, %v1461
          %1464 = vset.pattern.permute.xlu0 5
          %1465 = vperm.xlu0 %1464, %v1436
          %v1466 = vpop.permute.xlu0 %1465
          %v1468 = vmul.f32 %v1437, %v1466
          %1469 = vset.pattern.permute.xlu0 6
          %1470 = vperm.xlu0 %1469, %v1436
          %v1471 = vpop.permute.xlu0 %1470
          %v1473 = vmul.f32 %v1437, %v1471
          %1474 = vset.pattern.permute.xlu0 7
          %1475 = vperm.xlu0 %1474, %v1436
          %v1476 = vpop.permute.xlu0 %1475
          %v1478 = vmul.f32 %v1437, %v1476
          %v1479 = vsel %vm360, %v1443, %v1448
          %v1480 = vsel %vm407, %v1479, %v1453
          %v1481 = vsel %vm1420, %v1480, %v1458
          %v1482 = vsel %vm1422, %v1481, %v1463
          %v1483 = vsel %vm1424, %v1482, %v1468
          %v1484 = vsel %vm1426, %v1483, %v1473
          %v1485 = vsel %vm1428, %v1484, %v1478
          %v1486 = vsel %vm1430, %v1485, 0.0
          %1487 = vadd.xlane.f32.xlu0 %v1486
          %v1488 = vpop.xlane.xlu0 %1487
          %v1489 = vrcp.pop 32.0
          %v1490 = vmul.f32 %v1488, %v1489
          %v1491 = vsub.f32 %v1485, %v1490
          %v1492 = vmul.f32 %v1491, %v1491
          %v1493 = vsel %vm1430, %v1492, 0.0
          %1494 = vadd.xlane.f32.xlu0 %v1493
          %v1495 = vpop.xlane.xlu0 %1494
          %v1496 = vmul.f32 %v1495, %v1489
          %v1497 = vadd.f32 %v1496, 1e-05
          %v1498 = vrsqrt.pop %v1497
          %v1499 = vmul.f32 %v1491, %v1498
          %v1500 = vld [vmem:[%s3] sm:$0x1]
          %v1502 = vlaneseq
          %v1503 = vshrl.u32 %v1502, 7
          %v1504 = vsub.s32 0, %v1503
          %v1505 = vrot.slane %v1500, %v1504
          %v1507 = vmul.f32 %v1499, %v1505
          %v1508 = vld [vmem:[%s4] sm:$0x1]
          %v1510 = vlaneseq
          %v1511 = vshrl.u32 %v1510, 7
          %v1512 = vsub.s32 0, %v1511
          %v1513 = vrot.slane %v1508, %v1512
          %v1515 = vadd.f32 %v1507, %v1513
          %1516 = vst.msk [vmem:[%s340] sm:$0xff] %vm1430, %v1515
        $region60: #{tpu_custom_call.1} parent=39 // pred_fallthru
          _
        %s1517 = sand.u32 %s180, 1
        %s1518 = scalar_lea.sflag [#allocation7], %s1517
        %s1519 = sand.u32 %s180, 1
        %s1520 = smul.addr %s1519, 8
        %s1521 = scalar_lea.vmem [#allocation11], %s1520
        // Predicated region
        $region61: #{tpu_custom_call.1} parent=39 // pred_check
          %p1522 = pneg %p190
        $region62: #{tpu_custom_call.1} parent=39 // pred_check_branch
          %1524 = sbr.rel (%p1522) target = $region64
        $region63: #{tpu_custom_call.1} parent=39 // pred_region
          %s1526 = ssub.s32 128, 128
          %1527 = vsyncadd %s1518, %s1526
          %s1528 = sadd.s32 %s31, %s30
          %s1529 = smul.addr %s1528, 128
          %s1530 = scalar_lea.hbm %s5, %s1529
          %s1532 = sshll.u32 %s1521, 4
          %s1533 = int_to_ptr.vmem [resolvable:$true] %s1532
          %1535 = dma.vmem_to_hbm [thread:$0]  %s1533, 128, %s1530, %s1518
        $region64: #{tpu_custom_call.1} parent=39 // pred_fallthru
          _
      $region40: #{tpu_custom_call.1} parent=5 // pred_fallthru
        _
      %p1536 = scmp.le.s32.totalorder 2, %s20
      // Predicated region
      $region65: #{tpu_custom_call.1} parent=5 // pred_check
        %p1537 = pneg %p1536
      $region66: #{tpu_custom_call.1} parent=5 // pred_check_branch
        %1539 = sbr.rel (%p1537) target = $region68
      $region67: #{tpu_custom_call.1} parent=5 // pred_region
        %s1540 = ssub.s32 %s20, 2
        // Predicated region
        $region69: #{tpu_custom_call.1} parent=67 // pred_check
          %p1541 = pneg %p196
        $region70: #{tpu_custom_call.1} parent=67 // pred_check_branch
          %1543 = sbr.rel (%p1541) target = $region72
        $region71: #{tpu_custom_call.1} parent=67 // pred_region
          %s1544 = sand.u32 %s181, 1
          %s1545 = scalar_lea.sflag [#allocation7], %s1544
          %s1546 = sand.u32 %s181, 1
          %s1547 = smul.addr %s1546, 8
          %s1548 = scalar_lea.vmem [#allocation11], %s1547
          %1549 = dma.done %s1545, 128
        $region72: #{tpu_custom_call.1} parent=67 // pred_fallthru
          _
      $region68: #{tpu_custom_call.1} parent=5 // pred_fallthru
        _
    $region6: #{tpu_custom_call.1} parent=1 // loop_footer
      %s24 = sadd.s32 1, %s20
    $region7: #{tpu_custom_call.1} parent=1 // loop_footer_branch
      %19 = sbr.rel target = $region3
    $region8: #{tpu_custom_call.1} parent=1 // loop_exit
      _
    %1550 = vsyncpa [#allocation6], 1
    %s1551 = scalar_lea.sflag [#allocation6], 1
    %1552 = vsyncpa %s1551, 1
    %1553 = vsyncpa [#allocation9], 1
    %s1554 = scalar_lea.sflag [#allocation9], 1
    %1555 = vsyncpa %s1554, 1
    %1556 = vsyncpa [#allocation7], 1
    %s1557 = scalar_lea.sflag [#allocation7], 1
    %1558 = vsyncpa %s1557, 1

</llo_original>
